<compile_context>
chip_gen: v7x
topology: tpu7x:2x2x1
jax: 0.10.0
libtpu: 0.0.40
codegen_flags: <defaults>
</compile_context>

<pallas_src>
import collections
from functools import partial

import jax
import jax.numpy as jnp
from jax import lax
from jax.experimental import pallas as pl
from jax.experimental.pallas import tpu as pltpu

EPS = 1e-5

Cfg = collections.namedtuple(
    "Cfg",
    ["in_features", "n_extra", "h1", "h2", "h3", "out",
     "off_w2", "off_w3a", "off_w3b", "off_w4", "off_p1", "off_p2", "off_p34",
     "slab_rows", "slab_cols"])


def _round8(n):
    return ((n + 7) // 8) * 8


def _bn_train(h, gamma, beta):
    # Training-mode BatchNorm1d: batch mean + biased batch variance (f32).
    mean = jnp.mean(h, axis=0, keepdims=True)
    var = jnp.mean((h - mean) * (h - mean), axis=0, keepdims=True)
    return (h - mean) * lax.rsqrt(var + EPS) * gamma + beta


def _mlp_math(x, w1t, slab, cfg):
    """Forward for one [B, >= in+4] batch.  x/slab f32, w1t bf16 [H1, in+4]."""
    in_plus = cfg.in_features + cfg.n_extra
    xin = x if x.shape[1] == in_plus else x[:, :in_plus]
    xe = x[:, cfg.in_features:in_plus]            # 4 extra features for fc3

    # Static slices of the packed parameter slab.
    w2 = slab[cfg.off_w2:cfg.off_w2 + cfg.h1, :cfg.h2]
    w3a = slab[cfg.off_w3a:cfg.off_w3a + cfg.h2, :cfg.h3]
    w3b = slab[cfg.off_w3b:cfg.off_w3b + cfg.n_extra, :cfg.h3]
    w4 = slab[cfg.off_w4:cfg.off_w4 + cfg.h3, :cfg.out]
    b1 = slab[cfg.off_p1 + 0:cfg.off_p1 + 1, :cfg.h1]
    g1 = slab[cfg.off_p1 + 1:cfg.off_p1 + 2, :cfg.h1]
    be1 = slab[cfg.off_p1 + 2:cfg.off_p1 + 3, :cfg.h1]
    b2 = slab[cfg.off_p2 + 0:cfg.off_p2 + 1, :cfg.h2]
    g2 = slab[cfg.off_p2 + 1:cfg.off_p2 + 2, :cfg.h2]
    be2 = slab[cfg.off_p2 + 2:cfg.off_p2 + 3, :cfg.h2]
    b3 = slab[cfg.off_p34 + 0:cfg.off_p34 + 1, :cfg.h3]
    b4 = slab[cfg.off_p34 + 1:cfg.off_p34 + 2, :cfg.out]

    # fc1 -> bn1 -> tanh.  W1^T has 4 zero columns appended, so contracting the
    # full xin equals x[:, :in_features] @ W1 exactly.  NT contraction, bf16
    # operands, f32 MXU accumulation.
    h = lax.dot_general(xin.astype(jnp.bfloat16), w1t,
                        dimension_numbers=(((1,), (1,)), ((), ())),
                        preferred_element_type=jnp.float32)
    h = jnp.tanh(_bn_train(h + b1, g1, be1))

    # fc2 -> bn2 -> tanh (f32)
    h = jnp.dot(h, w2, preferred_element_type=jnp.float32) + b2
    h = jnp.tanh(_bn_train(h, g2, be2))

    # fc3(cat(h, xe)) == h @ W3a + xe @ W3b + b3  (split done at prepare time)
    h = (jnp.dot(h, w3a, preferred_element_type=jnp.float32)
         + jnp.dot(xe, w3b, preferred_element_type=jnp.float32) + b3)
    h = jnp.tanh(h)

    # fc4
    return jnp.dot(h, w4, preferred_element_type=jnp.float32) + b4


def motion_planning_kernel(x_ref, w1t_ref, slab_ref, o_ref, *, cfg):
    o_ref[...] = _mlp_math(x_ref[...], w1t_ref[...], slab_ref[...],
                           cfg).astype(o_ref.dtype)


def motion_planning_group_kernel(x_ref, w1t_ref, slab_ref, o_ref, *, cfg):
    # One independent batch group per grid step (weights stay VMEM-resident).
    o_ref[0] = _mlp_math(x_ref[0], w1t_ref[...], slab_ref[...],
                         cfg).astype(o_ref.dtype)


def prepare_params(params, n_extra=4):
    """One-time parameter packing.  Returns (cfg, arrays).

    cfg: hashable namedtuple of static ints (pass as a static jit argument).
    arrays: exactly two device arrays -- lane-dense bf16 W1^T and one f32 slab
            packing every other parameter.
    """
    (w1, b1, g1, be1, w2, b2, g2, be2, w3, b3, w4, b4) = params
    in_features, h1 = w1.shape
    h2 = w2.shape[1]
    h3 = w3.shape[1]
    out = w4.shape[1]

    off_w2 = 0
    off_w3a = _round8(off_w2 + h1)
    off_w3b = _round8(off_w3a + h2)
    off_w4 = _round8(off_w3b + n_extra)
    off_p1 = _round8(off_w4 + h3)
    off_p2 = _round8(off_p1 + 3)
    off_p34 = _round8(off_p2 + 3)
    rows = _round8(off_p34 + 2)
    cols = max(128, ((max(h1, h2, h3, out) + 127) // 128) * 128)

    cfg = Cfg(in_features, n_extra, h1, h2, h3, out,
              off_w2, off_w3a, off_w3b, off_w4, off_p1, off_p2, off_p34,
              rows, cols)

    # W1^T: [H1, in+4] bf16, lane-dense (dominant HBM payload ~0.48 MB instead
    # of the ~1.9 MB a [in+4, 32] layout pads to).  4 appended zero columns are
    # exactly zero in bf16, so feeding the full x[:, :in+4] is exact.
    w1t = jnp.pad(w1, ((0, n_extra), (0, 0))).T.astype(jnp.bfloat16)

    slab = jnp.zeros((rows, cols), jnp.float32)

    def put(s, row, a):
        a = jnp.asarray(a, jnp.float32)
        return s.at[row:row + a.shape[0], :a.shape[1]].set(a)

    width34 = max(h3, out)
    slab = put(slab, off_w2, w2)
    slab = put(slab, off_w3a, w3[:h2, :])
    slab = put(slab, off_w3b, w3[h2:, :])
    slab = put(slab, off_w4, w4)
    slab = put(slab, off_p1, jnp.stack([b1, g1, be1]))
    slab = put(slab, off_p2, jnp.stack([b2, g2, be2]))
    slab = put(slab, off_p34, jnp.stack([jnp.pad(b3, (0, width34 - h3)),
                                         jnp.pad(b4, (0, width34 - out))]))

    return cfg, {"w1t": w1t, "slab": slab}


def motion_planning_forward(x, arrays, cfg):
    """x: [B, >= in_features+4] f32.  Returns [B, output_size] f32."""
    B = x.shape[0]
    vmem = pl.BlockSpec(memory_space=pltpu.MemorySpace.VMEM)
    # Gridless single-core kernel: whole model (~1 MiB VMEM) fits trivially.
    return pl.pallas_call(
        partial(motion_planning_kernel, cfg=cfg),
        out_shape=jax.ShapeDtypeStruct((B, cfg.out), jnp.float32),
        in_specs=[vmem, vmem, vmem],
        out_specs=vmem,
    )(x, arrays["w1t"], arrays["slab"])


def motion_planning_forward_grouped(xg, arrays, cfg):
    """xg: [G, B, in_features+4] f32 -> [G, B, output_size] f32.

    G independent batches in one pallas_call.  The group axis is 'parallel'
    (shards across v7x's two TensorCores); W1^T / slab use constant index_maps
    so they stay VMEM-resident, amortizing the weight DMA + launch overhead.
    BatchNorm statistics are per group, identical to G independent calls.
    """
    G, B, in_plus = xg.shape
    assert in_plus == cfg.in_features + cfg.n_extra
    w1t, slab = arrays["w1t"], arrays["slab"]
    return pl.pallas_call(
        partial(motion_planning_group_kernel, cfg=cfg),
        out_shape=jax.ShapeDtypeStruct((G, B, cfg.out), jnp.float32),
        grid=(G,),
        in_specs=[pl.BlockSpec((1, B, in_plus), lambda g: (g, 0, 0)),
                  pl.BlockSpec(w1t.shape, lambda g: (0, 0)),
                  pl.BlockSpec(slab.shape, lambda g: (0, 0))],
        out_specs=pl.BlockSpec((1, B, cfg.out), lambda g: (g, 0, 0)),
        compiler_params=pltpu.CompilerParams(
            dimension_semantics=("parallel",)),
    )(xg, w1t, slab)


def init_params(key, input_size, h1, h2, h3, out_size):
    """Deterministic synthetic parameters (PyTorch-Linear-like uniform init)."""
    ks = jax.random.split(key, 8)

    def linear(k, fan_in, fan_out):
        bound = 1.0 / jnp.sqrt(jnp.float32(fan_in))
        kw, kb = jax.random.split(k)
        w = jax.random.uniform(kw, (fan_in, fan_out), jnp.float32, -bound, bound)
        b = jax.random.uniform(kb, (fan_out,), jnp.float32, -bound, bound)
        return w, b

    w1, b1 = linear(ks[0], input_size, h1)
    w2, b2 = linear(ks[1], h1, h2)
    w3, b3 = linear(ks[2], h2 + 4, h3)
    w4, b4 = linear(ks[3], h3, out_size)
    g1 = 1.0 + 0.1 * jax.random.normal(ks[4], (h1,), jnp.float32)
    be1 = 0.1 * jax.random.normal(ks[5], (h1,), jnp.float32)
    g2 = 1.0 + 0.1 * jax.random.normal(ks[6], (h2,), jnp.float32)
    be2 = 0.1 * jax.random.normal(ks[7], (h2,), jnp.float32)
    return (w1, b1, g1, be1, w2, b2, g2, be2, w3, b3, w4, b4)


def reference_forward(x, params, *, bf16_fc1=False):
    """Pure-JAX reference mirroring the PyTorch forward (training-mode BN).

    bf16_fc1=True mirrors the kernel's bf16 fc1 path (x AND W1 in bf16, f32 acc).
    """
    (w1, b1, g1, be1, w2, b2, g2, be2, w3, b3, w4, b4) = params
    in_features = w1.shape[0]

    def bn(h, g, be):
        m = jnp.mean(h, axis=0, keepdims=True)
        v = jnp.mean((h - m) ** 2, axis=0, keepdims=True)
        return (h - m) / jnp.sqrt(v + EPS) * g + be

    xm = x[:, :in_features]
    if bf16_fc1:
        h1 = jnp.dot(xm.astype(jnp.bfloat16), w1.astype(jnp.bfloat16),
                     preferred_element_type=jnp.float32)
    else:
        h1 = xm @ w1
    out = jnp.tanh(bn(h1 + b1, g1, be1))
    out = jnp.tanh(bn(out @ w2 + b2, g2, be2))
    out = jnp.concatenate([out, x[:, in_features:in_features + 4]], axis=1)
    out = jnp.tanh(out @ w3 + b3)
    return out @ w4 + b4


if __name__ == "__main__":
    # The module hard-codes x[:, :7500] / x[:, 7500:7504], so input_size is 7500;
    # hidden sizes are kept small.
    INPUT_SIZE = 7500
    H1, H2, H3, OUT = 32, 28, 32, 8
    B, G = 8, 2

    key = jax.random.PRNGKey(0)
    k_x, k_p, k_g = jax.random.split(key, 3)
    x = jax.random.normal(k_x, (B, INPUT_SIZE + 4), jnp.float32)
    params = init_params(k_p, INPUT_SIZE, H1, H2, H3, OUT)

    cfg, arrays = prepare_params(params)          # one-time parameter packing

    fwd = jax.jit(motion_planning_forward, static_argnames=("cfg",))
    out = jax.block_until_ready(fwd(x, arrays, cfg=cfg))
    assert out.shape == (B, OUT)

    # Tight check vs a pure-JAX mirror of the kernel math (bf16 fc1, f32 acc).
    ref_bf16 = reference_forward(x, params, bf16_fc1=True)
    err_bf16 = float(jnp.max(jnp.abs(out - ref_bf16)))
    assert jnp.allclose(out, ref_bf16, atol=2e-3, rtol=2e-3), (
        f"kernel vs bf16-mirror max abs err {err_bf16}")

    # Loose sanity check vs the exact f32 reference: bounds the deliberate bf16
    # quantization of fc1's activations and weights.
    ref_f32 = reference_forward(x, params, bf16_fc1=False)
    err_f32 = float(jnp.max(jnp.abs(out - ref_f32)))
    assert jnp.allclose(out, ref_f32, atol=1e-1, rtol=1e-1), (
        f"kernel vs f32 reference max abs err {err_f32}")

    # Grouped / throughput variant: G independent batches, one pallas_call.
    xg = jax.random.normal(k_g, (G, B, INPUT_SIZE + 4), jnp.float32)
    fwd_g = jax.jit(motion_planning_forward_grouped, static_argnames=("cfg",))
    out_g = jax.block_until_ready(fwd_g(xg, arrays, cfg=cfg))
    assert out_g.shape == (G, B, OUT)
    for g in range(G):
        ref_g = reference_forward(xg[g], params, bf16_fc1=True)
        err_g = float(jnp.max(jnp.abs(out_g[g] - ref_g)))
        assert jnp.allclose(out_g[g], ref_g, atol=2e-3, rtol=2e-3), (
            f"group {g} max abs err {err_g}")

    print("KERNEL_OK")
</pallas_src>

<mosaic_0001>
module attributes {stable_mosaic.version = 11 : i64} {
  func.func @motion_planning_kernel(%arg0: memref<8x7504xf32, #tpu.memory_space<vmem>>, %arg1: memref<32x7504xbf16, #tpu.memory_space<vmem>>, %arg2: memref<128x128xf32, #tpu.memory_space<vmem>>, %arg3: memref<8x8xf32, #tpu.memory_space<vmem>>) attributes {dimension_semantics = [], scalar_prefetch = 0 : i64, scratch_operands = 0 : i64, tpu.core_type = #tpu.core_type<tc>} {
    %c0 = arith.constant 0 : index
    %c0_0 = arith.constant 0 : index
    %0 = vector.load %arg0[%c0, %c0_0] : memref<8x7504xf32, #tpu.memory_space<vmem>>, vector<8x7504xf32>
    %c0_1 = arith.constant 0 : index
    %c0_2 = arith.constant 0 : index
    %1 = vector.load %arg1[%c0_1, %c0_2] : memref<32x7504xbf16, #tpu.memory_space<vmem>>, vector<32x7504xbf16>
    %c0_3 = arith.constant 0 : index
    %c0_4 = arith.constant 0 : index
    %2 = vector.load %arg2[%c0_3, %c0_4] : memref<128x128xf32, #tpu.memory_space<vmem>>, vector<128x128xf32>
    %3 = vector.extract_strided_slice %0 {offsets = [0, 7500], sizes = [8, 4], strides = [1, 1]} : vector<8x7504xf32> to vector<8x4xf32>
    %4 = vector.extract_strided_slice %2 {offsets = [0, 0], sizes = [32, 28], strides = [1, 1]} : vector<128x128xf32> to vector<32x28xf32>
    %5 = vector.extract_strided_slice %2 {offsets = [32, 0], sizes = [28, 32], strides = [1, 1]} : vector<128x128xf32> to vector<28x32xf32>
    %6 = vector.extract_strided_slice %2 {offsets = [64, 0], sizes = [4, 32], strides = [1, 1]} : vector<128x128xf32> to vector<4x32xf32>
    %7 = vector.extract_strided_slice %2 {offsets = [72, 0], sizes = [32, 8], strides = [1, 1]} : vector<128x128xf32> to vector<32x8xf32>
    %8 = vector.extract_strided_slice %2 {offsets = [104, 0], sizes = [1, 32], strides = [1, 1]} : vector<128x128xf32> to vector<1x32xf32>
    %9 = vector.extract_strided_slice %2 {offsets = [105, 0], sizes = [1, 32], strides = [1, 1]} : vector<128x128xf32> to vector<1x32xf32>
    %10 = vector.extract_strided_slice %2 {offsets = [106, 0], sizes = [1, 32], strides = [1, 1]} : vector<128x128xf32> to vector<1x32xf32>
    %11 = vector.extract_strided_slice %2 {offsets = [112, 0], sizes = [1, 28], strides = [1, 1]} : vector<128x128xf32> to vector<1x28xf32>
    %12 = vector.extract_strided_slice %2 {offsets = [113, 0], sizes = [1, 28], strides = [1, 1]} : vector<128x128xf32> to vector<1x28xf32>
    %13 = vector.extract_strided_slice %2 {offsets = [114, 0], sizes = [1, 28], strides = [1, 1]} : vector<128x128xf32> to vector<1x28xf32>
    %14 = vector.extract_strided_slice %2 {offsets = [120, 0], sizes = [1, 32], strides = [1, 1]} : vector<128x128xf32> to vector<1x32xf32>
    %15 = vector.extract_strided_slice %2 {offsets = [121, 0], sizes = [1, 8], strides = [1, 1]} : vector<128x128xf32> to vector<1x8xf32>
    %16 = arith.truncf %0 : vector<8x7504xf32> to vector<8x7504xbf16>
    %cst = arith.constant dense<0.000000e+00> : vector<8x32xf32>
    %17 = tpu.matmul %16, %1, %cst {dimension_numbers = #tpu.dot_dimension_numbers<[1], [1], [0], [0], [0, 0, 1, 0], [], []>} : vector<8x7504xbf16>, vector<32x7504xbf16>, vector<8x32xf32> -> vector<8x32xf32>
    %18 = vector.broadcast %8 : vector<1x32xf32> to vector<8x32xf32>
    %19 = arith.addf %17, %18 : vector<8x32xf32>
    %cst_5 = arith.constant dense<0.000000e+00> : vector<32xf32>
    %20 = vector.multi_reduction <add>, %19, %cst_5 [0] : vector<8x32xf32> to vector<32xf32>
    %21 = vector.shape_cast %20 : vector<32xf32> to vector<1x32xf32>
    %cst_6 = arith.constant 8.000000e+00 : f32
    %22 = vector.broadcast %cst_6 : f32 to vector<1x32xf32>
    %23 = arith.divf %21, %22 : vector<1x32xf32>
    %24 = vector.broadcast %23 : vector<1x32xf32> to vector<8x32xf32>
    %25 = arith.subf %19, %24 : vector<8x32xf32>
    %26 = vector.broadcast %23 : vector<1x32xf32> to vector<8x32xf32>
    %27 = arith.subf %19, %26 : vector<8x32xf32>
    %28 = arith.mulf %25, %27 : vector<8x32xf32>
    %cst_7 = arith.constant dense<0.000000e+00> : vector<32xf32>
    %29 = vector.multi_reduction <add>, %28, %cst_7 [0] : vector<8x32xf32> to vector<32xf32>
    %30 = vector.shape_cast %29 : vector<32xf32> to vector<1x32xf32>
    %cst_8 = arith.constant 8.000000e+00 : f32
    %31 = vector.broadcast %cst_8 : f32 to vector<1x32xf32>
    %32 = arith.divf %30, %31 : vector<1x32xf32>
    %33 = vector.broadcast %23 : vector<1x32xf32> to vector<8x32xf32>
    %34 = arith.subf %19, %33 : vector<8x32xf32>
    %cst_9 = arith.constant 9.99999974E-6 : f32
    %35 = vector.broadcast %cst_9 : f32 to vector<1x32xf32>
    %36 = arith.addf %32, %35 : vector<1x32xf32>
    %37 = math.rsqrt %36 : vector<1x32xf32>
    %38 = vector.broadcast %37 : vector<1x32xf32> to vector<8x32xf32>
    %39 = arith.mulf %34, %38 : vector<8x32xf32>
    %40 = vector.broadcast %9 : vector<1x32xf32> to vector<8x32xf32>
    %41 = arith.mulf %39, %40 : vector<8x32xf32>
    %42 = vector.broadcast %10 : vector<1x32xf32> to vector<8x32xf32>
    %43 = arith.addf %41, %42 : vector<8x32xf32>
    %44 = math.tanh %43 : vector<8x32xf32>
    %cst_10 = arith.constant dense<0.000000e+00> : vector<8x28xf32>
    %45 = tpu.matmul %44, %4, %cst_10 {dimension_numbers = #tpu.dot_dimension_numbers<[1], [0], [0], [1], [0, 0, 1, 1], [], []>} : vector<8x32xf32>, vector<32x28xf32>, vector<8x28xf32> -> vector<8x28xf32>
    %46 = vector.broadcast %11 : vector<1x28xf32> to vector<8x28xf32>
    %47 = arith.addf %45, %46 : vector<8x28xf32>
    %cst_11 = arith.constant dense<0.000000e+00> : vector<28xf32>
    %48 = vector.multi_reduction <add>, %47, %cst_11 [0] : vector<8x28xf32> to vector<28xf32>
    %49 = vector.shape_cast %48 : vector<28xf32> to vector<1x28xf32>
    %cst_12 = arith.constant 8.000000e+00 : f32
    %50 = vector.broadcast %cst_12 : f32 to vector<1x28xf32>
    %51 = arith.divf %49, %50 : vector<1x28xf32>
    %52 = vector.broadcast %51 : vector<1x28xf32> to vector<8x28xf32>
    %53 = arith.subf %47, %52 : vector<8x28xf32>
    %54 = vector.broadcast %51 : vector<1x28xf32> to vector<8x28xf32>
    %55 = arith.subf %47, %54 : vector<8x28xf32>
    %56 = arith.mulf %53, %55 : vector<8x28xf32>
    %cst_13 = arith.constant dense<0.000000e+00> : vector<28xf32>
    %57 = vector.multi_reduction <add>, %56, %cst_13 [0] : vector<8x28xf32> to vector<28xf32>
    %58 = vector.shape_cast %57 : vector<28xf32> to vector<1x28xf32>
    %cst_14 = arith.constant 8.000000e+00 : f32
    %59 = vector.broadcast %cst_14 : f32 to vector<1x28xf32>
    %60 = arith.divf %58, %59 : vector<1x28xf32>
    %61 = vector.broadcast %51 : vector<1x28xf32> to vector<8x28xf32>
    %62 = arith.subf %47, %61 : vector<8x28xf32>
    %cst_15 = arith.constant 9.99999974E-6 : f32
    %63 = vector.broadcast %cst_15 : f32 to vector<1x28xf32>
    %64 = arith.addf %60, %63 : vector<1x28xf32>
    %65 = math.rsqrt %64 : vector<1x28xf32>
    %66 = vector.broadcast %65 : vector<1x28xf32> to vector<8x28xf32>
    %67 = arith.mulf %62, %66 : vector<8x28xf32>
    %68 = vector.broadcast %12 : vector<1x28xf32> to vector<8x28xf32>
    %69 = arith.mulf %67, %68 : vector<8x28xf32>
    %70 = vector.broadcast %13 : vector<1x28xf32> to vector<8x28xf32>
    %71 = arith.addf %69, %70 : vector<8x28xf32>
    %72 = math.tanh %71 : vector<8x28xf32>
    %cst_16 = arith.constant dense<0.000000e+00> : vector<8x32xf32>
    %73 = tpu.matmul %72, %5, %cst_16 {dimension_numbers = #tpu.dot_dimension_numbers<[1], [0], [0], [1], [0, 0, 1, 1], [], []>} : vector<8x28xf32>, vector<28x32xf32>, vector<8x32xf32> -> vector<8x32xf32>
    %cst_17 = arith.constant dense<0.000000e+00> : vector<8x32xf32>
    %74 = tpu.matmul %3, %6, %cst_17 {dimension_numbers = #tpu.dot_dimension_numbers<[1], [0], [0], [1], [0, 0, 1, 1], [], []>} : vector<8x4xf32>, vector<4x32xf32>, vector<8x32xf32> -> vector<8x32xf32>
    %75 = arith.addf %73, %74 : vector<8x32xf32>
    %76 = vector.broadcast %14 : vector<1x32xf32> to vector<8x32xf32>
    %77 = arith.addf %75, %76 : vector<8x32xf32>
    %78 = math.tanh %77 : vector<8x32xf32>
    %cst_18 = arith.constant dense<0.000000e+00> : vector<8x8xf32>
    %79 = tpu.matmul %78, %7, %cst_18 {dimension_numbers = #tpu.dot_dimension_numbers<[1], [0], [0], [1], [0, 0, 1, 1], [], []>} : vector<8x32xf32>, vector<32x8xf32>, vector<8x8xf32> -> vector<8x8xf32>
    %80 = vector.broadcast %15 : vector<1x8xf32> to vector<8x8xf32>
    %81 = arith.addf %79, %80 : vector<8x8xf32>
    %c0_19 = arith.constant 0 : index
    %c0_20 = arith.constant 0 : index
    %82 = vector.load %arg3[%c0_19, %c0_20] : memref<8x8xf32, #tpu.memory_space<vmem>>, vector<8x8xf32>
    tpu.vector_store %arg3[%c0_19, %c0_20], %81 {strides = array<i32>} : memref<8x8xf32, #tpu.memory_space<vmem>>, vector<8x8xf32>,
    return
  }
}

</mosaic_0001>

<llo_original>
// kernel: motion_planning_forward.1
$region0: #{motion_planning_forward.1}
  #allocation0 [shape = 'u32[]', space=smem, size = 0x4, offset = 0x4, fixed_abs, tag = 'smem constant byte address 0x4 - core index']
  #allocation1 [shape = 'u32[144,128]{1,0:T(1,128)}', space=vmem, size = 0x12000, scoped, tag = 'internal scratch']
  %s0 = inlined_call_operand.hbm [shape: f32[8,7504], index: 0, kind: input, shape index: {}]
  %s1 = inlined_call_operand.hbm [shape: bf16[32,7504], index: 1, kind: input, shape index: {}]
  %s2 = inlined_call_operand.hbm [shape: f32[128,128], index: 2, kind: input, shape index: {}]
  %s3 = inlined_call_operand.hbm [shape: f32[8,8], index: 3, kind: output, shape index: {}]
  %s4 = sld [smem:[#allocation0]]
  $region34: #{motion_planning_forward.1} parent=0
    _
  %s6 = ssub.s32 1, %s4
  %s7 = scalar_select 0, %s6, %s4
  $region1: #{motion_planning_forward.1} parent=0
    #allocation2 [shape = 'u8[241664]{0}', space=vmem, size = 0x3b000, scoped, tag = 'input window, operand 0, single buffered']
    #allocation3 [shape = 's32[1]{0}', space=sflag, size = 0x4, scoped, tag = 'scoped memory for motion_planning_forward.1']
    #allocation4 [shape = 's32[1]{0}', space=sflag, size = 0x4, scoped, tag = 'scoped memory for motion_planning_forward.1']
    #allocation5 [shape = 'u8[483328]{0}', space=vmem, size = 0x76000, scoped, tag = 'input window, operand 1, single buffered']
    #allocation6 [shape = 's32[1]{0}', space=sflag, size = 0x4, scoped, tag = 'scoped memory for motion_planning_forward.1']
    #allocation7 [shape = 'u8[65536]{0}', space=vmem, size = 0x10000, scoped, tag = 'input window, operand 2, single buffered']
    #allocation8 [shape = 'u8[4096]{0}', space=vmem, size = 0x1000, scoped, tag = 'output window, operand 0, single buffered']
    %8 = vsyncpa [#allocation3], 0
    %9 = vsyncpa [#allocation6], 0
    %10 = vsyncpa [#allocation4], 0
    // Predicated region
    $region2: #{motion_planning_forward.1} parent=1 // pred_check
      _
    $region3: #{motion_planning_forward.1} parent=1 // pred_check_branch
      %12 = sbr.rel (0) target = $region5
    $region4: #{motion_planning_forward.1} parent=1 // pred_region
      %s14 = ssub.s32 7552, 7552
      %15 = vsyncadd [#allocation3], %s14
      %s17 = sshll.u32 [#allocation2], 4
      %s18 = int_to_ptr.vmem [resolvable:$true] %s17
      %20 = dma.hbm_to_vmem [thread:$0]  %s0, 7552, %s18, [#allocation3]
    $region5: #{motion_planning_forward.1} parent=1 // pred_fallthru
      _
    // Predicated region
    $region6: #{motion_planning_forward.1} parent=1 // pred_check
      _
    $region7: #{motion_planning_forward.1} parent=1 // pred_check_branch
      %22 = sbr.rel (0) target = $region9
    $region8: #{motion_planning_forward.1} parent=1 // pred_region
      %s24 = ssub.s32 15104, 15104
      %25 = vsyncadd [#allocation6], %s24
      %s26 = sshll.u32 [#allocation5], 4
      %s27 = int_to_ptr.vmem [resolvable:$true] %s26
      %32 = dma.hbm_to_vmem [thread:$0]  %s1, 15104, %s27, [#allocation6], 3776, 3776, 236
    $region9: #{motion_planning_forward.1} parent=1 // pred_fallthru
      _
    // Predicated region
    $region10: #{motion_planning_forward.1} parent=1 // pred_check
      _
    $region11: #{motion_planning_forward.1} parent=1 // pred_check_branch
      %34 = sbr.rel (0) target = $region13
    $region12: #{motion_planning_forward.1} parent=1 // pred_region
      %s36 = ssub.s32 2048, 2048
      %37 = vsyncadd [#allocation6], %s36
      %s38 = sshll.u32 [#allocation7], 4
      %s39 = int_to_ptr.vmem [resolvable:$true] %s38
      %44 = dma.hbm_to_vmem [thread:$0]  %s2, 2048, %s39, [#allocation6], 128, 128, 8
    $region13: #{motion_planning_forward.1} parent=1 // pred_fallthru
      _
    // Predicated region
    $region14: #{motion_planning_forward.1} parent=1 // pred_check
      _
    $region15: #{motion_planning_forward.1} parent=1 // pred_check_branch
      %46 = sbr.rel (0) target = $region17
    $region16: #{motion_planning_forward.1} parent=1 // pred_region
      %47 = dma.done [#allocation3], 7552
    $region17: #{motion_planning_forward.1} parent=1 // pred_fallthru
      _
    // Predicated region
    $region18: #{motion_planning_forward.1} parent=1 // pred_check
      _
    $region19: #{motion_planning_forward.1} parent=1 // pred_check_branch
      %49 = sbr.rel (0) target = $region21
    $region20: #{motion_planning_forward.1} parent=1 // pred_region
      %50 = dma.done [#allocation6], 15104
    $region21: #{motion_planning_forward.1} parent=1 // pred_fallthru
      _
    // Predicated region
    $region22: #{motion_planning_forward.1} parent=1 // pred_check
      _
    $region23: #{motion_planning_forward.1} parent=1 // pred_check_branch
      %52 = sbr.rel (0) target = $region25
    $region24: #{motion_planning_forward.1} parent=1 // pred_region
      %53 = dma.done [#allocation6], 2048
    $region25: #{motion_planning_forward.1} parent=1 // pred_fallthru
      _
    %v55 = vld [vmem:[#allocation2] sm:$0xff]
    %v56 = vld [vmem:[#allocation2 + $0x8] sm:$0xff]
    %v57 = vld [vmem:[#allocation2 + $0x10] sm:$0xff]
    %v58 = vld [vmem:[#allocation2 + $0x18] sm:$0xff]
    %v59 = vld [vmem:[#allocation2 + $0x20] sm:$0xff]
    %v60 = vld [vmem:[#allocation2 + $0x28] sm:$0xff]
    %v61 = vld [vmem:[#allocation2 + $0x30] sm:$0xff]
    %v62 = vld [vmem:[#allocation2 + $0x38] sm:$0xff]
    %v63 = vld [vmem:[#allocation2 + $0x40] sm:$0xff]
    %v64 = vld [vmem:[#allocation2 + $0x48] sm:$0xff]
    %v65 = vld [vmem:[#allocation2 + $0x50] sm:$0xff]
    %v66 = vld [vmem:[#allocation2 + $0x58] sm:$0xff]
    %v67 = vld [vmem:[#allocation2 + $0x60] sm:$0xff]
    %v68 = vld [vmem:[#allocation2 + $0x68] sm:$0xff]
    %v69 = vld [vmem:[#allocation2 + $0x70] sm:$0xff]
    %v70 = vld [vmem:[#allocation2 + $0x78] sm:$0xff]
    %v71 = vld [vmem:[#allocation2 + $0x80] sm:$0xff]
    %v72 = vld [vmem:[#allocation2 + $0x88] sm:$0xff]
    %v73 = vld [vmem:[#allocation2 + $0x90] sm:$0xff]
    %v74 = vld [vmem:[#allocation2 + $0x98] sm:$0xff]
    %v75 = vld [vmem:[#allocation2 + $0xa0] sm:$0xff]
    %v76 = vld [vmem:[#allocation2 + $0xa8] sm:$0xff]
    %v77 = vld [vmem:[#allocation2 + $0xb0] sm:$0xff]
    %v78 = vld [vmem:[#allocation2 + $0xb8] sm:$0xff]
    %v79 = vld [vmem:[#allocation2 + $0xc0] sm:$0xff]
    %v80 = vld [vmem:[#allocation2 + $0xc8] sm:$0xff]
    %v81 = vld [vmem:[#allocation2 + $0xd0] sm:$0xff]
    %v82 = vld [vmem:[#allocation2 + $0xd8] sm:$0xff]
    %v83 = vld [vmem:[#allocation2 + $0xe0] sm:$0xff]
    %v84 = vld [vmem:[#allocation2 + $0xe8] sm:$0xff]
    %v85 = vld [vmem:[#allocation2 + $0xf0] sm:$0xff]
    %v86 = vld [vmem:[#allocation2 + $0xf8] sm:$0xff]
    %v87 = vld [vmem:[#allocation2 + $0x100] sm:$0xff]
    %v88 = vld [vmem:[#allocation2 + $0x108] sm:$0xff]
    %v89 = vld [vmem:[#allocation2 + $0x110] sm:$0xff]
    %v90 = vld [vmem:[#allocation2 + $0x118] sm:$0xff]
    %v91 = vld [vmem:[#allocation2 + $0x120] sm:$0xff]
    %v92 = vld [vmem:[#allocation2 + $0x128] sm:$0xff]
    %v93 = vld [vmem:[#allocation2 + $0x130] sm:$0xff]
    %v94 = vld [vmem:[#allocation2 + $0x138] sm:$0xff]
    %v95 = vld [vmem:[#allocation2 + $0x140] sm:$0xff]
    %v96 = vld [vmem:[#allocation2 + $0x148] sm:$0xff]
    %v97 = vld [vmem:[#allocation2 + $0x150] sm:$0xff]
    %v98 = vld [vmem:[#allocation2 + $0x158] sm:$0xff]
    %v99 = vld [vmem:[#allocation2 + $0x160] sm:$0xff]
    %v100 = vld [vmem:[#allocation2 + $0x168] sm:$0xff]
    %v101 = vld [vmem:[#allocation2 + $0x170] sm:$0xff]
    %v102 = vld [vmem:[#allocation2 + $0x178] sm:$0xff]
    %v103 = vld [vmem:[#allocation2 + $0x180] sm:$0xff]
    %v104 = vld [vmem:[#allocation2 + $0x188] sm:$0xff]
    %v105 = vld [vmem:[#allocation2 + $0x190] sm:$0xff]
    %v106 = vld [vmem:[#allocation2 + $0x198] sm:$0xff]
    %v107 = vld [vmem:[#allocation2 + $0x1a0] sm:$0xff]
    %v108 = vld [vmem:[#allocation2 + $0x1a8] sm:$0xff]
    %v109 = vld [vmem:[#allocation2 + $0x1b0] sm:$0xff]
    %v110 = vld [vmem:[#allocation2 + $0x1b8] sm:$0xff]
    %v111 = vld [vmem:[#allocation2 + $0x1c0] sm:$0xff]
    %v112 = vld [vmem:[#allocation2 + $0x1c8] sm:$0xff]
    %v113 = vld [vmem:[#allocation2 + $0x1d0] sm:$0xff]
    %v114 = vld [vmem:[#allocation5] sm:$0xff]
    %v115 = vld [vmem:[#allocation5 + $0x8] sm:$0xff]
    %v116 = vld [vmem:[#allocation5 + $0x10] sm:$0xff]
    %v117 = vld [vmem:[#allocation5 + $0x18] sm:$0xff]
    %v118 = vld [vmem:[#allocation5 + $0x20] sm:$0xff]
    %v119 = vld [vmem:[#allocation5 + $0x28] sm:$0xff]
    %v120 = vld [vmem:[#allocation5 + $0x30] sm:$0xff]
    %v121 = vld [vmem:[#allocation5 + $0x38] sm:$0xff]
    %v122 = vld [vmem:[#allocation5 + $0x40] sm:$0xff]
    %v123 = vld [vmem:[#allocation5 + $0x48] sm:$0xff]
    %v124 = vld [vmem:[#allocation5 + $0x50] sm:$0xff]
    %v125 = vld [vmem:[#allocation5 + $0x58] sm:$0xff]
    %v126 = vld [vmem:[#allocation5 + $0x60] sm:$0xff]
    %v127 = vld [vmem:[#allocation5 + $0x68] sm:$0xff]
    %v128 = vld [vmem:[#allocation5 + $0x70] sm:$0xff]
    %v129 = vld [vmem:[#allocation5 + $0x78] sm:$0xff]
    %v130 = vld [vmem:[#allocation5 + $0x80] sm:$0xff]
    %v131 = vld [vmem:[#allocation5 + $0x88] sm:$0xff]
    %v132 = vld [vmem:[#allocation5 + $0x90] sm:$0xff]
    %v133 = vld [vmem:[#allocation5 + $0x98] sm:$0xff]
    %v134 = vld [vmem:[#allocation5 + $0xa0] sm:$0xff]
    %v135 = vld [vmem:[#allocation5 + $0xa8] sm:$0xff]
    %v136 = vld [vmem:[#allocation5 + $0xb0] sm:$0xff]
    %v137 = vld [vmem:[#allocation5 + $0xb8] sm:$0xff]
    %v138 = vld [vmem:[#allocation5 + $0xc0] sm:$0xff]
    %v139 = vld [vmem:[#allocation5 + $0xc8] sm:$0xff]
    %v140 = vld [vmem:[#allocation5 + $0xd0] sm:$0xff]
    %v141 = vld [vmem:[#allocation5 + $0xd8] sm:$0xff]
    %v142 = vld [vmem:[#allocation5 + $0xe0] sm:$0xff]
    %v143 = vld [vmem:[#allocation5 + $0xe8] sm:$0xf]
    %v144 = vld [vmem:[#allocation5 + $0xec] sm:$0xff]
    %v145 = vld [vmem:[#allocation5 + $0xf4] sm:$0xff]
    %v146 = vld [vmem:[#allocation5 + $0xfc] sm:$0xff]
    %v147 = vld [vmem:[#allocation5 + $0x104] sm:$0xff]
    %v148 = vld [vmem:[#allocation5 + $0x10c] sm:$0xff]
    %v149 = vld [vmem:[#allocation5 + $0x114] sm:$0xff]
    %v150 = vld [vmem:[#allocation5 + $0x11c] sm:$0xff]
    %v151 = vld [vmem:[#allocation5 + $0x124] sm:$0xff]
    %v152 = vld [vmem:[#allocation5 + $0x12c] sm:$0xff]
    %v153 = vld [vmem:[#allocation5 + $0x134] sm:$0xff]
    %v154 = vld [vmem:[#allocation5 + $0x13c] sm:$0xff]
    %v155 = vld [vmem:[#allocation5 + $0x144] sm:$0xff]
    %v156 = vld [vmem:[#allocation5 + $0x14c] sm:$0xff]
    %v157 = vld [vmem:[#allocation5 + $0x154] sm:$0xff]
    %v158 = vld [vmem:[#allocation5 + $0x15c] sm:$0xff]
    %v159 = vld [vmem:[#allocation5 + $0x164] sm:$0xff]
    %v160 = vld [vmem:[#allocation5 + $0x16c] sm:$0xff]
    %v161 = vld [vmem:[#allocation5 + $0x174] sm:$0xff]
    %v162 = vld [vmem:[#allocation5 + $0x17c] sm:$0xff]
    %v163 = vld [vmem:[#allocation5 + $0x184] sm:$0xff]
    %v164 = vld [vmem:[#allocation5 + $0x18c] sm:$0xff]
    %v165 = vld [vmem:[#allocation5 + $0x194] sm:$0xff]
    %v166 = vld [vmem:[#allocation5 + $0x19c] sm:$0xff]
    %v167 = vld [vmem:[#allocation5 + $0x1a4] sm:$0xff]
    %v168 = vld [vmem:[#allocation5 + $0x1ac] sm:$0xff]
    %v169 = vld [vmem:[#allocation5 + $0x1b4] sm:$0xff]
    %v170 = vld [vmem:[#allocation5 + $0x1bc] sm:$0xff]
    %v171 = vld [vmem:[#allocation5 + $0x1c4] sm:$0xff]
    %v172 = vld [vmem:[#allocation5 + $0x1cc] sm:$0xff]
    %v173 = vld [vmem:[#allocation5 + $0x1d4] sm:$0xf]
    %v174 = vld [vmem:[#allocation5 + $0x1d8] sm:$0xff]
    %v175 = vld [vmem:[#allocation5 + $0x1e0] sm:$0xff]
    %v176 = vld [vmem:[#allocation5 + $0x1e8] sm:$0xff]
    %v177 = vld [vmem:[#allocation5 + $0x1f0] sm:$0xff]
    %v178 = vld [vmem:[#allocation5 + $0x1f8] sm:$0xff]
    %v179 = vld [vmem:[#allocation5 + $0x200] sm:$0xff]
    %v180 = vld [vmem:[#allocation5 + $0x208] sm:$0xff]
    %v181 = vld [vmem:[#allocation5 + $0x210] sm:$0xff]
    %v182 = vld [vmem:[#allocation5 + $0x218] sm:$0xff]
    %v183 = vld [vmem:[#allocation5 + $0x220] sm:$0xff]
    %v184 = vld [vmem:[#allocation5 + $0x228] sm:$0xff]
    %v185 = vld [vmem:[#allocation5 + $0x230] sm:$0xff]
    %v186 = vld [vmem:[#allocation5 + $0x238] sm:$0xff]
    %v187 = vld [vmem:[#allocation5 + $0x240] sm:$0xff]
    %v188 = vld [vmem:[#allocation5 + $0x248] sm:$0xff]
    %v189 = vld [vmem:[#allocation5 + $0x250] sm:$0xff]
    %v190 = vld [vmem:[#allocation5 + $0x258] sm:$0xff]
    %v191 = vld [vmem:[#allocation5 + $0x260] sm:$0xff]
    %v192 = vld [vmem:[#allocation5 + $0x268] sm:$0xff]
    %v193 = vld [vmem:[#allocation5 + $0x270] sm:$0xff]
    %v194 = vld [vmem:[#allocation5 + $0x278] sm:$0xff]
    %v195 = vld [vmem:[#allocation5 + $0x280] sm:$0xff]
    %v196 = vld [vmem:[#allocation5 + $0x288] sm:$0xff]
    %v197 = vld [vmem:[#allocation5 + $0x290] sm:$0xff]
    %v198 = vld [vmem:[#allocation5 + $0x298] sm:$0xff]
    %v199 = vld [vmem:[#allocation5 + $0x2a0] sm:$0xff]
    %v200 = vld [vmem:[#allocation5 + $0x2a8] sm:$0xff]
    %v201 = vld [vmem:[#allocation5 + $0x2b0] sm:$0xff]
    %v202 = vld [vmem:[#allocation5 + $0x2b8] sm:$0xff]
    %v203 = vld [vmem:[#allocation5 + $0x2c0] sm:$0xf]
    %v204 = vld [vmem:[#allocation5 + $0x2c4] sm:$0xff]
    %v205 = vld [vmem:[#allocation5 + $0x2cc] sm:$0xff]
    %v206 = vld [vmem:[#allocation5 + $0x2d4] sm:$0xff]
    %v207 = vld [vmem:[#allocation5 + $0x2dc] sm:$0xff]
    %v208 = vld [vmem:[#allocation5 + $0x2e4] sm:$0xff]
    %v209 = vld [vmem:[#allocation5 + $0x2ec] sm:$0xff]
    %v210 = vld [vmem:[#allocation5 + $0x2f4] sm:$0xff]
    %v211 = vld [vmem:[#allocation5 + $0x2fc] sm:$0xff]
    %v212 = vld [vmem:[#allocation5 + $0x304] sm:$0xff]
    %v213 = vld [vmem:[#allocation5 + $0x30c] sm:$0xff]
    %v214 = vld [vmem:[#allocation5 + $0x314] sm:$0xff]
    %v215 = vld [vmem:[#allocation5 + $0x31c] sm:$0xff]
    %v216 = vld [vmem:[#allocation5 + $0x324] sm:$0xff]
    %v217 = vld [vmem:[#allocation5 + $0x32c] sm:$0xff]
    %v218 = vld [vmem:[#allocation5 + $0x334] sm:$0xff]
    %v219 = vld [vmem:[#allocation5 + $0x33c] sm:$0xff]
    %v220 = vld [vmem:[#allocation5 + $0x344] sm:$0xff]
    %v221 = vld [vmem:[#allocation5 + $0x34c] sm:$0xff]
    %v222 = vld [vmem:[#allocation5 + $0x354] sm:$0xff]
    %v223 = vld [vmem:[#allocation5 + $0x35c] sm:$0xff]
    %v224 = vld [vmem:[#allocation5 + $0x364] sm:$0xff]
    %v225 = vld [vmem:[#allocation5 + $0x36c] sm:$0xff]
    %v226 = vld [vmem:[#allocation5 + $0x374] sm:$0xff]
    %v227 = vld [vmem:[#allocation5 + $0x37c] sm:$0xff]
    %v228 = vld [vmem:[#allocation5 + $0x384] sm:$0xff]
    %v229 = vld [vmem:[#allocation5 + $0x38c] sm:$0xff]
    %v230 = vld [vmem:[#allocation5 + $0x394] sm:$0xff]
    %v231 = vld [vmem:[#allocation5 + $0x39c] sm:$0xff]
    %v232 = vld [vmem:[#allocation5 + $0x3a4] sm:$0xff]
    %v233 = vld [vmem:[#allocation5 + $0x3ac] sm:$0xf]
    %v234 = vld [vmem:[#allocation7] sm:$0xff]
    %v235 = vld [vmem:[#allocation7 + $0x8] sm:$0xff]
    %v236 = vld [vmem:[#allocation7 + $0x10] sm:$0xff]
    %v237 = vld [vmem:[#allocation7 + $0x18] sm:$0xff]
    %v238 = vld [vmem:[#allocation7 + $0x20] sm:$0xff]
    %v239 = vld [vmem:[#allocation7 + $0x28] sm:$0xff]
    %v240 = vld [vmem:[#allocation7 + $0x30] sm:$0xff]
    %v241 = vld [vmem:[#allocation7 + $0x38] sm:$0xff]
    %v242 = vld [vmem:[#allocation7 + $0x40] sm:$0xff]
    %v243 = vld [vmem:[#allocation7 + $0x48] sm:$0xff]
    %v244 = vld [vmem:[#allocation7 + $0x50] sm:$0xff]
    %v245 = vld [vmem:[#allocation7 + $0x58] sm:$0xff]
    %v246 = vld [vmem:[#allocation7 + $0x60] sm:$0xff]
    %v247 = vld [vmem:[#allocation7 + $0x68] sm:$0xff]
    %v248 = vld [vmem:[#allocation7 + $0x70] sm:$0xff]
    %v249 = vld [vmem:[#allocation7 + $0x78] sm:$0xff]
    %v250 = vpack.c.bf16 %v55, %v55
    %v251 = vpack.c.bf16 %v56, %v56
    %v252 = vpack.c.bf16 %v57, %v57
    %v253 = vpack.c.bf16 %v58, %v58
    %v254 = vpack.c.bf16 %v59, %v59
    %v255 = vpack.c.bf16 %v60, %v60
    %v256 = vpack.c.bf16 %v61, %v61
    %v257 = vpack.c.bf16 %v62, %v62
    %v258 = vpack.c.bf16 %v63, %v63
    %v259 = vpack.c.bf16 %v64, %v64
    %v260 = vpack.c.bf16 %v65, %v65
    %v261 = vpack.c.bf16 %v66, %v66
    %v262 = vpack.c.bf16 %v67, %v67
    %v263 = vpack.c.bf16 %v68, %v68
    %v264 = vpack.c.bf16 %v69, %v69
    %v265 = vpack.c.bf16 %v70, %v70
    %v266 = vpack.c.bf16 %v71, %v71
    %v267 = vpack.c.bf16 %v72, %v72
    %v268 = vpack.c.bf16 %v73, %v73
    %v269 = vpack.c.bf16 %v74, %v74
    %v270 = vpack.c.bf16 %v75, %v75
    %v271 = vpack.c.bf16 %v76, %v76
    %v272 = vpack.c.bf16 %v77, %v77
    %v273 = vpack.c.bf16 %v78, %v78
    %v274 = vpack.c.bf16 %v79, %v79
    %v275 = vpack.c.bf16 %v80, %v80
    %v276 = vpack.c.bf16 %v81, %v81
    %v277 = vpack.c.bf16 %v82, %v82
    %v278 = vpack.c.bf16 %v83, %v83
    %v279 = vpack.c.bf16 %v84, %v84
    %v280 = vpack.c.bf16 %v85, %v85
    %v281 = vpack.c.bf16 %v86, %v86
    %v282 = vpack.c.bf16 %v87, %v87
    %v283 = vpack.c.bf16 %v88, %v88
    %v284 = vpack.c.bf16 %v89, %v89
    %v285 = vpack.c.bf16 %v90, %v90
    %v286 = vpack.c.bf16 %v91, %v91
    %v287 = vpack.c.bf16 %v92, %v92
    %v288 = vpack.c.bf16 %v93, %v93
    %v289 = vpack.c.bf16 %v94, %v94
    %v290 = vpack.c.bf16 %v95, %v95
    %v291 = vpack.c.bf16 %v96, %v96
    %v292 = vpack.c.bf16 %v97, %v97
    %v293 = vpack.c.bf16 %v98, %v98
    %v294 = vpack.c.bf16 %v99, %v99
    %v295 = vpack.c.bf16 %v100, %v100
    %v296 = vpack.c.bf16 %v101, %v101
    %v297 = vpack.c.bf16 %v102, %v102
    %v298 = vpack.c.bf16 %v103, %v103
    %v299 = vpack.c.bf16 %v104, %v104
    %v300 = vpack.c.bf16 %v105, %v105
    %v301 = vpack.c.bf16 %v106, %v106
    %v302 = vpack.c.bf16 %v107, %v107
    %v303 = vpack.c.bf16 %v108, %v108
    %v304 = vpack.c.bf16 %v109, %v109
    %v305 = vpack.c.bf16 %v110, %v110
    %v306 = vpack.c.bf16 %v111, %v111
    %v307 = vpack.c.bf16 %v112, %v112
    %v308 = vpack.c.bf16 %v113, %v113
    %v309 = vlaneseq
    %v310 = vshrl.u32 %v309, 7
    %v311 = vsub.s32 0, %v310
    %v312 = vrot.slane %v247, %v311
    %v433 = vunpack.c.l.b16 %v114
    %v434 = vunpack.c.h.b16 %v114
    %v435 = vunpack.c.l.b16 %v115
    %v436 = vunpack.c.h.b16 %v115
    %v437 = vunpack.c.l.b16 %v116
    %v438 = vunpack.c.h.b16 %v116
    %v439 = vunpack.c.l.b16 %v117
    %v440 = vunpack.c.h.b16 %v117
    %v441 = vunpack.c.l.b16 %v118
    %v442 = vunpack.c.h.b16 %v118
    %v443 = vunpack.c.l.b16 %v119
    %v444 = vunpack.c.h.b16 %v119
    %v445 = vunpack.c.l.b16 %v120
    %v446 = vunpack.c.h.b16 %v120
    %v447 = vunpack.c.l.b16 %v121
    %v448 = vunpack.c.h.b16 %v121
    %v449 = vunpack.c.l.b16 %v122
    %v450 = vunpack.c.h.b16 %v122
    %v451 = vunpack.c.l.b16 %v123
    %v452 = vunpack.c.h.b16 %v123
    %v453 = vunpack.c.l.b16 %v124
    %v454 = vunpack.c.h.b16 %v124
    %v455 = vunpack.c.l.b16 %v125
    %v456 = vunpack.c.h.b16 %v125
    %v457 = vunpack.c.l.b16 %v126
    %v458 = vunpack.c.h.b16 %v126
    %v459 = vunpack.c.l.b16 %v127
    %v460 = vunpack.c.h.b16 %v127
    %v461 = vunpack.c.l.b16 %v128
    %v462 = vunpack.c.h.b16 %v128
    %v463 = vunpack.c.l.b16 %v129
    %v464 = vunpack.c.h.b16 %v129
    %v465 = vunpack.c.l.b16 %v130
    %v466 = vunpack.c.h.b16 %v130
    %v467 = vunpack.c.l.b16 %v131
    %v468 = vunpack.c.h.b16 %v131
    %v469 = vunpack.c.l.b16 %v132
    %v470 = vunpack.c.h.b16 %v132
    %v471 = vunpack.c.l.b16 %v133
    %v472 = vunpack.c.h.b16 %v133
    %v473 = vunpack.c.l.b16 %v134
    %v474 = vunpack.c.h.b16 %v134
    %v475 = vunpack.c.l.b16 %v135
    %v476 = vunpack.c.h.b16 %v135
    %v477 = vunpack.c.l.b16 %v136
    %v478 = vunpack.c.h.b16 %v136
    %v479 = vunpack.c.l.b16 %v137
    %v480 = vunpack.c.h.b16 %v137
    %v481 = vunpack.c.l.b16 %v138
    %v482 = vunpack.c.h.b16 %v138
    %v483 = vunpack.c.l.b16 %v139
    %v484 = vunpack.c.h.b16 %v139
    %v485 = vunpack.c.l.b16 %v140
    %v486 = vunpack.c.h.b16 %v140
    %v487 = vunpack.c.l.b16 %v141
    %v488 = vunpack.c.h.b16 %v141
    %v489 = vunpack.c.l.b16 %v142
    %v490 = vunpack.c.h.b16 %v142
    %v491 = vunpack.c.l.b16 %v143
    %v492 = vunpack.c.l.b16 %v144
    %v493 = vunpack.c.h.b16 %v144
    %v494 = vunpack.c.l.b16 %v145
    %v495 = vunpack.c.h.b16 %v145
    %v496 = vunpack.c.l.b16 %v146
    %v497 = vunpack.c.h.b16 %v146
    %v498 = vunpack.c.l.b16 %v147
    %v499 = vunpack.c.h.b16 %v147
    %v500 = vunpack.c.l.b16 %v148
    %v501 = vunpack.c.h.b16 %v148
    %v502 = vunpack.c.l.b16 %v149
    %v503 = vunpack.c.h.b16 %v149
    %v504 = vunpack.c.l.b16 %v150
    %v505 = vunpack.c.h.b16 %v150
    %v506 = vunpack.c.l.b16 %v151
    %v507 = vunpack.c.h.b16 %v151
    %v508 = vunpack.c.l.b16 %v152
    %v509 = vunpack.c.h.b16 %v152
    %v510 = vunpack.c.l.b16 %v153
    %v511 = vunpack.c.h.b16 %v153
    %v512 = vunpack.c.l.b16 %v154
    %v513 = vunpack.c.h.b16 %v154
    %v514 = vunpack.c.l.b16 %v155
    %v515 = vunpack.c.h.b16 %v155
    %v516 = vunpack.c.l.b16 %v156
    %v517 = vunpack.c.h.b16 %v156
    %v518 = vunpack.c.l.b16 %v157
    %v519 = vunpack.c.h.b16 %v157
    %v520 = vunpack.c.l.b16 %v158
    %v521 = vunpack.c.h.b16 %v158
    %v522 = vunpack.c.l.b16 %v159
    %v523 = vunpack.c.h.b16 %v159
    %v524 = vunpack.c.l.b16 %v160
    %v525 = vunpack.c.h.b16 %v160
    %v526 = vunpack.c.l.b16 %v161
    %v527 = vunpack.c.h.b16 %v161
    %v528 = vunpack.c.l.b16 %v162
    %v529 = vunpack.c.h.b16 %v162
    %v530 = vunpack.c.l.b16 %v163
    %v531 = vunpack.c.h.b16 %v163
    %v532 = vunpack.c.l.b16 %v164
    %v533 = vunpack.c.h.b16 %v164
    %v534 = vunpack.c.l.b16 %v165
    %v535 = vunpack.c.h.b16 %v165
    %v536 = vunpack.c.l.b16 %v166
    %v537 = vunpack.c.h.b16 %v166
    %v538 = vunpack.c.l.b16 %v167
    %v539 = vunpack.c.h.b16 %v167
    %v540 = vunpack.c.l.b16 %v168
    %v541 = vunpack.c.h.b16 %v168
    %v542 = vunpack.c.l.b16 %v169
    %v543 = vunpack.c.h.b16 %v169
    %v544 = vunpack.c.l.b16 %v170
    %v545 = vunpack.c.h.b16 %v170
    %v546 = vunpack.c.l.b16 %v171
    %v547 = vunpack.c.h.b16 %v171
    %v548 = vunpack.c.l.b16 %v172
    %v549 = vunpack.c.h.b16 %v172
    %v550 = vunpack.c.l.b16 %v173
    %v551 = vunpack.c.l.b16 %v174
    %v552 = vunpack.c.h.b16 %v174
    %v553 = vunpack.c.l.b16 %v175
    %v554 = vunpack.c.h.b16 %v175
    %v555 = vunpack.c.l.b16 %v176
    %v556 = vunpack.c.h.b16 %v176
    %v557 = vunpack.c.l.b16 %v177
    %v558 = vunpack.c.h.b16 %v177
    %v559 = vunpack.c.l.b16 %v178
    %v560 = vunpack.c.h.b16 %v178
    %v561 = vunpack.c.l.b16 %v179
    %v562 = vunpack.c.h.b16 %v179
    %v563 = vunpack.c.l.b16 %v180
    %v564 = vunpack.c.h.b16 %v180
    %v565 = vunpack.c.l.b16 %v181
    %v566 = vunpack.c.h.b16 %v181
    %v567 = vunpack.c.l.b16 %v182
    %v568 = vunpack.c.h.b16 %v182
    %v569 = vunpack.c.l.b16 %v183
    %v570 = vunpack.c.h.b16 %v183
    %v571 = vunpack.c.l.b16 %v184
    %v572 = vunpack.c.h.b16 %v184
    %v573 = vunpack.c.l.b16 %v185
    %v574 = vunpack.c.h.b16 %v185
    %v575 = vunpack.c.l.b16 %v186
    %v576 = vunpack.c.h.b16 %v186
    %v577 = vunpack.c.l.b16 %v187
    %v578 = vunpack.c.h.b16 %v187
    %v579 = vunpack.c.l.b16 %v188
    %v580 = vunpack.c.h.b16 %v188
    %v581 = vunpack.c.l.b16 %v189
    %v582 = vunpack.c.h.b16 %v189
    %v583 = vunpack.c.l.b16 %v190
    %v584 = vunpack.c.h.b16 %v190
    %v585 = vunpack.c.l.b16 %v191
    %v586 = vunpack.c.h.b16 %v191
    %v587 = vunpack.c.l.b16 %v192
    %v588 = vunpack.c.h.b16 %v192
    %v589 = vunpack.c.l.b16 %v193
    %v590 = vunpack.c.h.b16 %v193
    %v591 = vunpack.c.l.b16 %v194
    %v592 = vunpack.c.h.b16 %v194
    %v593 = vunpack.c.l.b16 %v195
    %v594 = vunpack.c.h.b16 %v195
    %v595 = vunpack.c.l.b16 %v196
    %v596 = vunpack.c.h.b16 %v196
    %v597 = vunpack.c.l.b16 %v197
    %v598 = vunpack.c.h.b16 %v197
    %v599 = vunpack.c.l.b16 %v198
    %v600 = vunpack.c.h.b16 %v198
    %v601 = vunpack.c.l.b16 %v199
    %v602 = vunpack.c.h.b16 %v199
    %v603 = vunpack.c.l.b16 %v200
    %v604 = vunpack.c.h.b16 %v200
    %v605 = vunpack.c.l.b16 %v201
    %v606 = vunpack.c.h.b16 %v201
    %v607 = vunpack.c.l.b16 %v202
    %v608 = vunpack.c.h.b16 %v202
    %v609 = vunpack.c.l.b16 %v203
    %v610 = vunpack.c.l.b16 %v204
    %v611 = vunpack.c.h.b16 %v204
    %v612 = vunpack.c.l.b16 %v205
    %v613 = vunpack.c.h.b16 %v205
    %v614 = vunpack.c.l.b16 %v206
    %v615 = vunpack.c.h.b16 %v206
    %v616 = vunpack.c.l.b16 %v207
    %v617 = vunpack.c.h.b16 %v207
    %v618 = vunpack.c.l.b16 %v208
    %v619 = vunpack.c.h.b16 %v208
    %v620 = vunpack.c.l.b16 %v209
    %v621 = vunpack.c.h.b16 %v209
    %v622 = vunpack.c.l.b16 %v210
    %v623 = vunpack.c.h.b16 %v210
    %v624 = vunpack.c.l.b16 %v211
    %v625 = vunpack.c.h.b16 %v211
    %v626 = vunpack.c.l.b16 %v212
    %v627 = vunpack.c.h.b16 %v212
    %v628 = vunpack.c.l.b16 %v213
    %v629 = vunpack.c.h.b16 %v213
    %v630 = vunpack.c.l.b16 %v214
    %v631 = vunpack.c.h.b16 %v214
    %v632 = vunpack.c.l.b16 %v215
    %v633 = vunpack.c.h.b16 %v215
    %v634 = vunpack.c.l.b16 %v216
    %v635 = vunpack.c.h.b16 %v216
    %v636 = vunpack.c.l.b16 %v217
    %v637 = vunpack.c.h.b16 %v217
    %v638 = vunpack.c.l.b16 %v218
    %v639 = vunpack.c.h.b16 %v218
    %v640 = vunpack.c.l.b16 %v219
    %v641 = vunpack.c.h.b16 %v219
    %v642 = vunpack.c.l.b16 %v220
    %v643 = vunpack.c.h.b16 %v220
    %v644 = vunpack.c.l.b16 %v221
    %v645 = vunpack.c.h.b16 %v221
    %v646 = vunpack.c.l.b16 %v222
    %v647 = vunpack.c.h.b16 %v222
    %v648 = vunpack.c.l.b16 %v223
    %v649 = vunpack.c.h.b16 %v223
    %v650 = vunpack.c.l.b16 %v224
    %v651 = vunpack.c.h.b16 %v224
    %v652 = vunpack.c.l.b16 %v225
    %v653 = vunpack.c.h.b16 %v225
    %v654 = vunpack.c.l.b16 %v226
    %v655 = vunpack.c.h.b16 %v226
    %v656 = vunpack.c.l.b16 %v227
    %v657 = vunpack.c.h.b16 %v227
    %v658 = vunpack.c.l.b16 %v228
    %v659 = vunpack.c.h.b16 %v228
    %v660 = vunpack.c.l.b16 %v229
    %v661 = vunpack.c.h.b16 %v229
    %v662 = vunpack.c.l.b16 %v230
    %v663 = vunpack.c.h.b16 %v230
    %v664 = vunpack.c.l.b16 %v231
    %v665 = vunpack.c.h.b16 %v231
    %v666 = vunpack.c.l.b16 %v232
    %v667 = vunpack.c.h.b16 %v232
    %v668 = vunpack.c.l.b16 %v233
    %v669 = vpack.c.b16 %v492, %v433
    %v670 = vpack.c.b16 %v493, %v434
    %v671 = vpack.c.b16 %v494, %v435
    %v672 = vpack.c.b16 %v495, %v436
    %v673 = vpack.c.b16 %v496, %v437
    %v674 = vpack.c.b16 %v497, %v438
    %v675 = vpack.c.b16 %v498, %v439
    %v676 = vpack.c.b16 %v499, %v440
    %v677 = vpack.c.b16 %v500, %v441
    %v678 = vpack.c.b16 %v501, %v442
    %v679 = vpack.c.b16 %v502, %v443
    %v680 = vpack.c.b16 %v503, %v444
    %v681 = vpack.c.b16 %v504, %v445
    %v682 = vpack.c.b16 %v505, %v446
    %v683 = vpack.c.b16 %v506, %v447
    %v684 = vpack.c.b16 %v507, %v448
    %v685 = vpack.c.b16 %v508, %v449
    %v686 = vpack.c.b16 %v509, %v450
    %v687 = vpack.c.b16 %v510, %v451
    %v688 = vpack.c.b16 %v511, %v452
    %v689 = vpack.c.b16 %v512, %v453
    %v690 = vpack.c.b16 %v513, %v454
    %v691 = vpack.c.b16 %v514, %v455
    %v692 = vpack.c.b16 %v515, %v456
    %v693 = vpack.c.b16 %v516, %v457
    %v694 = vpack.c.b16 %v517, %v458
    %v695 = vpack.c.b16 %v518, %v459
    %v696 = vpack.c.b16 %v519, %v460
    %v697 = vpack.c.b16 %v520, %v461
    %v698 = vpack.c.b16 %v521, %v462
    %v699 = vpack.c.b16 %v522, %v463
    %v700 = vpack.c.b16 %v523, %v464
    %v701 = vpack.c.b16 %v524, %v465
    %v702 = vpack.c.b16 %v525, %v466
    %v703 = vpack.c.b16 %v526, %v467
    %v704 = vpack.c.b16 %v527, %v468
    %v705 = vpack.c.b16 %v528, %v469
    %v706 = vpack.c.b16 %v529, %v470
    %v707 = vpack.c.b16 %v530, %v471
    %v708 = vpack.c.b16 %v531, %v472
    %v709 = vpack.c.b16 %v532, %v473
    %v710 = vpack.c.b16 %v533, %v474
    %v711 = vpack.c.b16 %v534, %v475
    %v712 = vpack.c.b16 %v535, %v476
    %v713 = vpack.c.b16 %v536, %v477
    %v714 = vpack.c.b16 %v537, %v478
    %v715 = vpack.c.b16 %v538, %v479
    %v716 = vpack.c.b16 %v539, %v480
    %v717 = vpack.c.b16 %v540, %v481
    %v718 = vpack.c.b16 %v541, %v482
    %v719 = vpack.c.b16 %v542, %v483
    %v720 = vpack.c.b16 %v543, %v484
    %v721 = vpack.c.b16 %v544, %v485
    %v722 = vpack.c.b16 %v545, %v486
    %v723 = vpack.c.b16 %v546, %v487
    %v724 = vpack.c.b16 %v547, %v488
    %v725 = vpack.c.b16 %v548, %v489
    %v726 = vpack.c.b16 %v549, %v490
    %v727 = vpack.c.b16 %v550, %v491
    %v728 = vpack.c.b16 %v610, %v551
    %v729 = vpack.c.b16 %v611, %v552
    %v730 = vpack.c.b16 %v612, %v553
    %v731 = vpack.c.b16 %v613, %v554
    %v732 = vpack.c.b16 %v614, %v555
    %v733 = vpack.c.b16 %v615, %v556
    %v734 = vpack.c.b16 %v616, %v557
    %v735 = vpack.c.b16 %v617, %v558
    %v736 = vpack.c.b16 %v618, %v559
    %v737 = vpack.c.b16 %v619, %v560
    %v738 = vpack.c.b16 %v620, %v561
    %v739 = vpack.c.b16 %v621, %v562
    %v740 = vpack.c.b16 %v622, %v563
    %v741 = vpack.c.b16 %v623, %v564
    %v742 = vpack.c.b16 %v624, %v565
    %v743 = vpack.c.b16 %v625, %v566
    %v744 = vpack.c.b16 %v626, %v567
    %v745 = vpack.c.b16 %v627, %v568
    %v746 = vpack.c.b16 %v628, %v569
    %v747 = vpack.c.b16 %v629, %v570
    %v748 = vpack.c.b16 %v630, %v571
    %v749 = vpack.c.b16 %v631, %v572
    %v750 = vpack.c.b16 %v632, %v573
    %v751 = vpack.c.b16 %v633, %v574
    %v752 = vpack.c.b16 %v634, %v575
    %v753 = vpack.c.b16 %v635, %v576
    %v754 = vpack.c.b16 %v636, %v577
    %v755 = vpack.c.b16 %v637, %v578
    %v756 = vpack.c.b16 %v638, %v579
    %v757 = vpack.c.b16 %v639, %v580
    %v758 = vpack.c.b16 %v640, %v581
    %v759 = vpack.c.b16 %v641, %v582
    %v760 = vpack.c.b16 %v642, %v583
    %v761 = vpack.c.b16 %v643, %v584
    %v762 = vpack.c.b16 %v644, %v585
    %v763 = vpack.c.b16 %v645, %v586
    %v764 = vpack.c.b16 %v646, %v587
    %v765 = vpack.c.b16 %v647, %v588
    %v766 = vpack.c.b16 %v648, %v589
    %v767 = vpack.c.b16 %v649, %v590
    %v768 = vpack.c.b16 %v650, %v591
    %v769 = vpack.c.b16 %v651, %v592
    %v770 = vpack.c.b16 %v652, %v593
    %v771 = vpack.c.b16 %v653, %v594
    %v772 = vpack.c.b16 %v654, %v595
    %v773 = vpack.c.b16 %v655, %v596
    %v774 = vpack.c.b16 %v656, %v597
    %v775 = vpack.c.b16 %v657, %v598
    %v776 = vpack.c.b16 %v658, %v599
    %v777 = vpack.c.b16 %v659, %v600
    %v778 = vpack.c.b16 %v660, %v601
    %v779 = vpack.c.b16 %v661, %v602
    %v780 = vpack.c.b16 %v662, %v603
    %v781 = vpack.c.b16 %v663, %v604
    %v782 = vpack.c.b16 %v664, %v605
    %v783 = vpack.c.b16 %v665, %v606
    %v784 = vpack.c.b16 %v666, %v607
    %v785 = vpack.c.b16 %v667, %v608
    %v786 = vpack.c.b16 %v668, %v609
    %vm903 = vcmask 654336
    %v905 = vsel %vm903, %v308, 0
    %v908 = vsel %vm903, %v727, 0
    %v911 = vsel %vm903, %v786, 0
    %913 = vmatprep.subr.bf16.mxu0 %v670
    %914 = vmatpush1.bf16.xpose.msra.mxu0 %v669
    %915 = vmatprep.subr.bf16.mxu0 %v729
    %916 = vmatpush1.bf16.xpose.msra.mxu0 %v728
    %917 = vmatprep.subr.bf16.mxu0 0
    %918 = vmatpush1.bf16.xpose.msra.mxu0 0
    %919 = vmatprep.subr.bf16.mxu0 0
    %920 = vmatpush1.bf16.xpose.msra.mxu0 0
    %921 = vmatprep.subr.bf16.mxu0 0
    %922 = vmatpush1.bf16.xpose.msra.mxu0 0
    %923 = vmatprep.subr.bf16.mxu0 0
    %924 = vmatpush1.bf16.xpose.msra.mxu0 0
    %925 = vmatprep.subr.bf16.mxu0 0
    %926 = vmatpush1.bf16.xpose.msra.mxu0 0
    %927 = vmatprep.subr.bf16.mxu0 0
    %928 = vmatpush1.bf16.xpose.msra.mxu0 0
    %929 = vmatprep.subr.bf16.mxu0 0
    %930 = vmatpush1.bf16.xpose.msra.mxu0 0
    %931 = vmatprep.subr.bf16.mxu0 0
    %932 = vmatpush1.bf16.xpose.msra.mxu0 0
    %933 = vmatprep.subr.bf16.mxu0 0
    %934 = vmatpush1.bf16.xpose.msra.mxu0 0
    %935 = vmatprep.subr.bf16.mxu0 0
    %936 = vmatpush1.bf16.xpose.msra.mxu0 0
    %937 = vmatprep.subr.bf16.mxu0 0
    %938 = vmatpush1.bf16.xpose.msra.mxu0 0
    %939 = vmatprep.subr.bf16.mxu0 0
    %940 = vmatpush1.bf16.xpose.msra.mxu0 0
    %941 = vmatprep.subr.bf16.mxu0 0
    %942 = vmatpush1.bf16.xpose.msra.mxu0 0
    %943 = vmatprep.subr.bf16.mxu0 0
    %944 = vmatpush1.bf16.xpose.msra.mxu0 0
    %945 = vmatprep.mubr.bf16.mxu0 %v251
    %946 = vmatmul.mubr.bf16.gmra.mrb[0].mxu0 %v250
    %v947 = vpop.f32.mrb[0].mxu0
    %v948 = vadd.f32 %v312, %v947
    %v949 = vpop.f32.mrb[0].mxu0
    %v950 = vpop.f32.mrb[0].mxu0
    %v951 = vpop.f32.mrb[0].mxu0
    %952 = vdwg.mxu0
    %953 = vmatprep.subr.bf16.mxu0 %v672
    %954 = vmatpush1.bf16.xpose.msra.mxu0 %v671
    %955 = vmatprep.subr.bf16.mxu0 %v731
    %956 = vmatpush1.bf16.xpose.msra.mxu0 %v730
    %957 = vmatprep.subr.bf16.mxu0 0
    %958 = vmatpush1.bf16.xpose.msra.mxu0 0
    %959 = vmatprep.subr.bf16.mxu0 0
    %960 = vmatpush1.bf16.xpose.msra.mxu0 0
    %961 = vmatprep.subr.bf16.mxu0 0
    %962 = vmatpush1.bf16.xpose.msra.mxu0 0
    %963 = vmatprep.subr.bf16.mxu0 0
    %964 = vmatpush1.bf16.xpose.msra.mxu0 0
    %965 = vmatprep.subr.bf16.mxu0 0
    %966 = vmatpush1.bf16.xpose.msra.mxu0 0
    %967 = vmatprep.subr.bf16.mxu0 0
    %968 = vmatpush1.bf16.xpose.msra.mxu0 0
    %969 = vmatprep.subr.bf16.mxu0 0
    %970 = vmatpush1.bf16.xpose.msra.mxu0 0
    %971 = vmatprep.subr.bf16.mxu0 0
    %972 = vmatpush1.bf16.xpose.msra.mxu0 0
    %973 = vmatprep.subr.bf16.mxu0 0
    %974 = vmatpush1.bf16.xpose.msra.mxu0 0
    %975 = vmatprep.subr.bf16.mxu0 0
    %976 = vmatpush1.bf16.xpose.msra.mxu0 0
    %977 = vmatprep.subr.bf16.mxu0 0
    %978 = vmatpush1.bf16.xpose.msra.mxu0 0
    %979 = vmatprep.subr.bf16.mxu0 0
    %980 = vmatpush1.bf16.xpose.msra.mxu0 0
    %981 = vmatprep.subr.bf16.mxu0 0
    %982 = vmatpush1.bf16.xpose.msra.mxu0 0
    %983 = vmatprep.subr.bf16.mxu0 0
    %984 = vmatpush1.bf16.xpose.msra.mxu0 0
    %985 = vmatprep.mubr.bf16.mxu0 %v253
    %986 = vmatmul.mubr.bf16.gmra.mrb[0].mxu0 %v252
    %v987 = vpop.f32.mrb[0].mxu0
    %v988 = vadd.f32 %v948, %v987
    %v989 = vpop.f32.mrb[0].mxu0
    %v990 = vpop.f32.mrb[0].mxu0
    %v991 = vpop.f32.mrb[0].mxu0
    %992 = vdwg.mxu0
    %993 = vmatprep.subr.bf16.mxu0 %v674
    %994 = vmatpush1.bf16.xpose.msra.mxu0 %v673
    %995 = vmatprep.subr.bf16.mxu0 %v733
    %996 = vmatpush1.bf16.xpose.msra.mxu0 %v732
    %997 = vmatprep.subr.bf16.mxu0 0
    %998 = vmatpush1.bf16.xpose.msra.mxu0 0
    %999 = vmatprep.subr.bf16.mxu0 0
    %1000 = vmatpush1.bf16.xpose.msra.mxu0 0
    %1001 = vmatprep.subr.bf16.mxu0 0
    %1002 = vmatpush1.bf16.xpose.msra.mxu0 0
    %1003 = vmatprep.subr.bf16.mxu0 0
    %1004 = vmatpush1.bf16.xpose.msra.mxu0 0
    %1005 = vmatprep.subr.bf16.mxu0 0
    %1006 = vmatpush1.bf16.xpose.msra.mxu0 0
    %1007 = vmatprep.subr.bf16.mxu0 0
    %1008 = vmatpush1.bf16.xpose.msra.mxu0 0
    %1009 = vmatprep.subr.bf16.mxu0 0
    %1010 = vmatpush1.bf16.xpose.msra.mxu0 0
    %1011 = vmatprep.subr.bf16.mxu0 0
    %1012 = vmatpush1.bf16.xpose.msra.mxu0 0
    %1013 = vmatprep.subr.bf16.mxu0 0
    %1014 = vmatpush1.bf16.xpose.msra.mxu0 0
    %1015 = vmatprep.subr.bf16.mxu0 0
    %1016 = vmatpush1.bf16.xpose.msra.mxu0 0
    %1017 = vmatprep.subr.bf16.mxu0 0
    %1018 = vmatpush1.bf16.xpose.msra.mxu0 0
    %1019 = vmatprep.subr.bf16.mxu0 0
    %1020 = vmatpush1.bf16.xpose.msra.mxu0 0
    %1021 = vmatprep.subr.bf16.mxu0 0
    %1022 = vmatpush1.bf16.xpose.msra.mxu0 0
    %1023 = vmatprep.subr.bf16.mxu0 0
    %1024 = vmatpush1.bf16.xpose.msra.mxu0 0
    %1025 = vmatprep.mubr.bf16.mxu0 %v255
    %1026 = vmatmul.mubr.bf16.gmra.mrb[0].mxu0 %v254
    %v1027 = vpop.f32.mrb[0].mxu0
    %v1028 = vadd.f32 %v988, %v1027
    %v1029 = vpop.f32.mrb[0].mxu0
    %v1030 = vpop.f32.mrb[0].mxu0
    %v1031 = vpop.f32.mrb[0].mxu0
    %1032 = vdwg.mxu0
    %1033 = vmatprep.subr.bf16.mxu0 %v676
    %1034 = vmatpush1.bf16.xpose.msra.mxu0 %v675
    %1035 = vmatprep.subr.bf16.mxu0 %v735
    %1036 = vmatpush1.bf16.xpose.msra.mxu0 %v734
    %1037 = vmatprep.subr.bf16.mxu0 0
    %1038 = vmatpush1.bf16.xpose.msra.mxu0 0
    %1039 = vmatprep.subr.bf16.mxu0 0
    %1040 = vmatpush1.bf16.xpose.msra.mxu0 0
    %1041 = vmatprep.subr.bf16.mxu0 0
    %1042 = vmatpush1.bf16.xpose.msra.mxu0 0
    %1043 = vmatprep.subr.bf16.mxu0 0
    %1044 = vmatpush1.bf16.xpose.msra.mxu0 0
    %1045 = vmatprep.subr.bf16.mxu0 0
    %1046 = vmatpush1.bf16.xpose.msra.mxu0 0
    %1047 = vmatprep.subr.bf16.mxu0 0
    %1048 = vmatpush1.bf16.xpose.msra.mxu0 0
    %1049 = vmatprep.subr.bf16.mxu0 0
    %1050 = vmatpush1.bf16.xpose.msra.mxu0 0
    %1051 = vmatprep.subr.bf16.mxu0 0
    %1052 = vmatpush1.bf16.xpose.msra.mxu0 0
    %1053 = vmatprep.subr.bf16.mxu0 0
    %1054 = vmatpush1.bf16.xpose.msra.mxu0 0
    %1055 = vmatprep.subr.bf16.mxu0 0
    %1056 = vmatpush1.bf16.xpose.msra.mxu0 0
    %1057 = vmatprep.subr.bf16.mxu0 0
    %1058 = vmatpush1.bf16.xpose.msra.mxu0 0
    %1059 = vmatprep.subr.bf16.mxu0 0
    %1060 = vmatpush1.bf16.xpose.msra.mxu0 0
    %1061 = vmatprep.subr.bf16.mxu0 0
    %1062 = vmatpush1.bf16.xpose.msra.mxu0 0
    %1063 = vmatprep.subr.bf16.mxu0 0
    %1064 = vmatpush1.bf16.xpose.msra.mxu0 0
    %1065 = vmatprep.mubr.bf16.mxu0 %v257
    %1066 = vmatmul.mubr.bf16.gmra.mrb[0].mxu0 %v256
    %v1067 = vpop.f32.mrb[0].mxu0
    %v1068 = vadd.f32 %v1028, %v1067
    %v1069 = vpop.f32.mrb[0].mxu0
    %v1070 = vpop.f32.mrb[0].mxu0
    %v1071 = vpop.f32.mrb[0].mxu0
    %1072 = vdwg.mxu0
    %1073 = vmatprep.subr.bf16.mxu0 %v678
    %1074 = vmatpush1.bf16.xpose.msra.mxu0 %v677
    %1075 = vmatprep.subr.bf16.mxu0 %v737
    %1076 = vmatpush1.bf16.xpose.msra.mxu0 %v736
    %1077 = vmatprep.subr.bf16.mxu0 0
    %1078 = vmatpush1.bf16.xpose.msra.mxu0 0
    %1079 = vmatprep.subr.bf16.mxu0 0
    %1080 = vmatpush1.bf16.xpose.msra.mxu0 0
    %1081 = vmatprep.subr.bf16.mxu0 0
    %1082 = vmatpush1.bf16.xpose.msra.mxu0 0
    %1083 = vmatprep.subr.bf16.mxu0 0
    %1084 = vmatpush1.bf16.xpose.msra.mxu0 0
    %1085 = vmatprep.subr.bf16.mxu0 0
    %1086 = vmatpush1.bf16.xpose.msra.mxu0 0
    %1087 = vmatprep.subr.bf16.mxu0 0
    %1088 = vmatpush1.bf16.xpose.msra.mxu0 0
    %1089 = vmatprep.subr.bf16.mxu0 0
    %1090 = vmatpush1.bf16.xpose.msra.mxu0 0
    %1091 = vmatprep.subr.bf16.mxu0 0
    %1092 = vmatpush1.bf16.xpose.msra.mxu0 0
    %1093 = vmatprep.subr.bf16.mxu0 0
    %1094 = vmatpush1.bf16.xpose.msra.mxu0 0
    %1095 = vmatprep.subr.bf16.mxu0 0
    %1096 = vmatpush1.bf16.xpose.msra.mxu0 0
    %1097 = vmatprep.subr.bf16.mxu0 0
    %1098 = vmatpush1.bf16.xpose.msra.mxu0 0
    %1099 = vmatprep.subr.bf16.mxu0 0
    %1100 = vmatpush1.bf16.xpose.msra.mxu0 0
    %1101 = vmatprep.subr.bf16.mxu0 0
    %1102 = vmatpush1.bf16.xpose.msra.mxu0 0
    %1103 = vmatprep.subr.bf16.mxu0 0
    %1104 = vmatpush1.bf16.xpose.msra.mxu0 0
    %1105 = vmatprep.mubr.bf16.mxu0 %v259
    %1106 = vmatmul.mubr.bf16.gmra.mrb[0].mxu0 %v258
    %v1107 = vpop.f32.mrb[0].mxu0
    %v1108 = vadd.f32 %v1068, %v1107
    %v1109 = vpop.f32.mrb[0].mxu0
    %v1110 = vpop.f32.mrb[0].mxu0
    %v1111 = vpop.f32.mrb[0].mxu0
    %1112 = vdwg.mxu0
    %1113 = vmatprep.subr.bf16.mxu0 %v680
    %1114 = vmatpush1.bf16.xpose.msra.mxu0 %v679
    %1115 = vmatprep.subr.bf16.mxu0 %v739
    %1116 = vmatpush1.bf16.xpose.msra.mxu0 %v738
    %1117 = vmatprep.subr.bf16.mxu0 0
    %1118 = vmatpush1.bf16.xpose.msra.mxu0 0
    %1119 = vmatprep.subr.bf16.mxu0 0
    %1120 = vmatpush1.bf16.xpose.msra.mxu0 0
    %1121 = vmatprep.subr.bf16.mxu0 0
    %1122 = vmatpush1.bf16.xpose.msra.mxu0 0
    %1123 = vmatprep.subr.bf16.mxu0 0
    %1124 = vmatpush1.bf16.xpose.msra.mxu0 0
    %1125 = vmatprep.subr.bf16.mxu0 0
    %1126 = vmatpush1.bf16.xpose.msra.mxu0 0
    %1127 = vmatprep.subr.bf16.mxu0 0
    %1128 = vmatpush1.bf16.xpose.msra.mxu0 0
    %1129 = vmatprep.subr.bf16.mxu0 0
    %1130 = vmatpush1.bf16.xpose.msra.mxu0 0
    %1131 = vmatprep.subr.bf16.mxu0 0
    %1132 = vmatpush1.bf16.xpose.msra.mxu0 0
    %1133 = vmatprep.subr.bf16.mxu0 0
    %1134 = vmatpush1.bf16.xpose.msra.mxu0 0
    %1135 = vmatprep.subr.bf16.mxu0 0
    %1136 = vmatpush1.bf16.xpose.msra.mxu0 0
    %1137 = vmatprep.subr.bf16.mxu0 0
    %1138 = vmatpush1.bf16.xpose.msra.mxu0 0
    %1139 = vmatprep.subr.bf16.mxu0 0
    %1140 = vmatpush1.bf16.xpose.msra.mxu0 0
    %1141 = vmatprep.subr.bf16.mxu0 0
    %1142 = vmatpush1.bf16.xpose.msra.mxu0 0
    %1143 = vmatprep.subr.bf16.mxu0 0
    %1144 = vmatpush1.bf16.xpose.msra.mxu0 0
    %1145 = vmatprep.mubr.bf16.mxu0 %v261
    %1146 = vmatmul.mubr.bf16.gmra.mrb[0].mxu0 %v260
    %v1147 = vpop.f32.mrb[0].mxu0
    %v1148 = vadd.f32 %v1108, %v1147
    %v1149 = vpop.f32.mrb[0].mxu0
    %v1150 = vpop.f32.mrb[0].mxu0
    %v1151 = vpop.f32.mrb[0].mxu0
    %1152 = vdwg.mxu0
    %1153 = vmatprep.subr.bf16.mxu0 %v682
    %1154 = vmatpush1.bf16.xpose.msra.mxu0 %v681
    %1155 = vmatprep.subr.bf16.mxu0 %v741
    %1156 = vmatpush1.bf16.xpose.msra.mxu0 %v740
    %1157 = vmatprep.subr.bf16.mxu0 0
    %1158 = vmatpush1.bf16.xpose.msra.mxu0 0
    %1159 = vmatprep.subr.bf16.mxu0 0
    %1160 = vmatpush1.bf16.xpose.msra.mxu0 0
    %1161 = vmatprep.subr.bf16.mxu0 0
    %1162 = vmatpush1.bf16.xpose.msra.mxu0 0
    %1163 = vmatprep.subr.bf16.mxu0 0
    %1164 = vmatpush1.bf16.xpose.msra.mxu0 0
    %1165 = vmatprep.subr.bf16.mxu0 0
    %1166 = vmatpush1.bf16.xpose.msra.mxu0 0
    %1167 = vmatprep.subr.bf16.mxu0 0
    %1168 = vmatpush1.bf16.xpose.msra.mxu0 0
    %1169 = vmatprep.subr.bf16.mxu0 0
    %1170 = vmatpush1.bf16.xpose.msra.mxu0 0
    %1171 = vmatprep.subr.bf16.mxu0 0
    %1172 = vmatpush1.bf16.xpose.msra.mxu0 0
    %1173 = vmatprep.subr.bf16.mxu0 0
    %1174 = vmatpush1.bf16.xpose.msra.mxu0 0
    %1175 = vmatprep.subr.bf16.mxu0 0
    %1176 = vmatpush1.bf16.xpose.msra.mxu0 0
    %1177 = vmatprep.subr.bf16.mxu0 0
    %1178 = vmatpush1.bf16.xpose.msra.mxu0 0
    %1179 = vmatprep.subr.bf16.mxu0 0
    %1180 = vmatpush1.bf16.xpose.msra.mxu0 0
    %1181 = vmatprep.subr.bf16.mxu0 0
    %1182 = vmatpush1.bf16.xpose.msra.mxu0 0
    %1183 = vmatprep.subr.bf16.mxu0 0
    %1184 = vmatpush1.bf16.xpose.msra.mxu0 0
    %1185 = vmatprep.mubr.bf16.mxu0 %v263
    %1186 = vmatmul.mubr.bf16.gmra.mrb[0].mxu0 %v262
    %v1187 = vpop.f32.mrb[0].mxu0
    %v1188 = vadd.f32 %v1148, %v1187
    %v1189 = vpop.f32.mrb[0].mxu0
    %v1190 = vpop.f32.mrb[0].mxu0
    %v1191 = vpop.f32.mrb[0].mxu0
    %1192 = vdwg.mxu0
    %1193 = vmatprep.subr.bf16.mxu0 %v684
    %1194 = vmatpush1.bf16.xpose.msra.mxu0 %v683
    %1195 = vmatprep.subr.bf16.mxu0 %v743
    %1196 = vmatpush1.bf16.xpose.msra.mxu0 %v742
    %1197 = vmatprep.subr.bf16.mxu0 0
    %1198 = vmatpush1.bf16.xpose.msra.mxu0 0
    %1199 = vmatprep.subr.bf16.mxu0 0
    %1200 = vmatpush1.bf16.xpose.msra.mxu0 0
    %1201 = vmatprep.subr.bf16.mxu0 0
    %1202 = vmatpush1.bf16.xpose.msra.mxu0 0
    %1203 = vmatprep.subr.bf16.mxu0 0
    %1204 = vmatpush1.bf16.xpose.msra.mxu0 0
    %1205 = vmatprep.subr.bf16.mxu0 0
    %1206 = vmatpush1.bf16.xpose.msra.mxu0 0
    %1207 = vmatprep.subr.bf16.mxu0 0
    %1208 = vmatpush1.bf16.xpose.msra.mxu0 0
    %1209 = vmatprep.subr.bf16.mxu0 0
    %1210 = vmatpush1.bf16.xpose.msra.mxu0 0
    %1211 = vmatprep.subr.bf16.mxu0 0
    %1212 = vmatpush1.bf16.xpose.msra.mxu0 0
    %1213 = vmatprep.subr.bf16.mxu0 0
    %1214 = vmatpush1.bf16.xpose.msra.mxu0 0
    %1215 = vmatprep.subr.bf16.mxu0 0
    %1216 = vmatpush1.bf16.xpose.msra.mxu0 0
    %1217 = vmatprep.subr.bf16.mxu0 0
    %1218 = vmatpush1.bf16.xpose.msra.mxu0 0
    %1219 = vmatprep.subr.bf16.mxu0 0
    %1220 = vmatpush1.bf16.xpose.msra.mxu0 0
    %1221 = vmatprep.subr.bf16.mxu0 0
    %1222 = vmatpush1.bf16.xpose.msra.mxu0 0
    %1223 = vmatprep.subr.bf16.mxu0 0
    %1224 = vmatpush1.bf16.xpose.msra.mxu0 0
    %1225 = vmatprep.mubr.bf16.mxu0 %v265
    %1226 = vmatmul.mubr.bf16.gmra.mrb[0].mxu0 %v264
    %v1227 = vpop.f32.mrb[0].mxu0
    %v1228 = vadd.f32 %v1188, %v1227
    %v1229 = vpop.f32.mrb[0].mxu0
    %v1230 = vpop.f32.mrb[0].mxu0
    %v1231 = vpop.f32.mrb[0].mxu0
    %1232 = vdwg.mxu0
    %1233 = vmatprep.subr.bf16.mxu0 %v686
    %1234 = vmatpush1.bf16.xpose.msra.mxu0 %v685
    %1235 = vmatprep.subr.bf16.mxu0 %v745
    %1236 = vmatpush1.bf16.xpose.msra.mxu0 %v744
    %1237 = vmatprep.subr.bf16.mxu0 0
    %1238 = vmatpush1.bf16.xpose.msra.mxu0 0
    %1239 = vmatprep.subr.bf16.mxu0 0
    %1240 = vmatpush1.bf16.xpose.msra.mxu0 0
    %1241 = vmatprep.subr.bf16.mxu0 0
    %1242 = vmatpush1.bf16.xpose.msra.mxu0 0
    %1243 = vmatprep.subr.bf16.mxu0 0
    %1244 = vmatpush1.bf16.xpose.msra.mxu0 0
    %1245 = vmatprep.subr.bf16.mxu0 0
    %1246 = vmatpush1.bf16.xpose.msra.mxu0 0
    %1247 = vmatprep.subr.bf16.mxu0 0
    %1248 = vmatpush1.bf16.xpose.msra.mxu0 0
    %1249 = vmatprep.subr.bf16.mxu0 0
    %1250 = vmatpush1.bf16.xpose.msra.mxu0 0
    %1251 = vmatprep.subr.bf16.mxu0 0
    %1252 = vmatpush1.bf16.xpose.msra.mxu0 0
    %1253 = vmatprep.subr.bf16.mxu0 0
    %1254 = vmatpush1.bf16.xpose.msra.mxu0 0
    %1255 = vmatprep.subr.bf16.mxu0 0
    %1256 = vmatpush1.bf16.xpose.msra.mxu0 0
    %1257 = vmatprep.subr.bf16.mxu0 0
    %1258 = vmatpush1.bf16.xpose.msra.mxu0 0
    %1259 = vmatprep.subr.bf16.mxu0 0
    %1260 = vmatpush1.bf16.xpose.msra.mxu0 0
    %1261 = vmatprep.subr.bf16.mxu0 0
    %1262 = vmatpush1.bf16.xpose.msra.mxu0 0
    %1263 = vmatprep.subr.bf16.mxu0 0
    %1264 = vmatpush1.bf16.xpose.msra.mxu0 0
    %1265 = vmatprep.mubr.bf16.mxu0 %v267
    %1266 = vmatmul.mubr.bf16.gmra.mrb[0].mxu0 %v266
    %v1267 = vpop.f32.mrb[0].mxu0
    %v1268 = vadd.f32 %v1228, %v1267
    %v1269 = vpop.f32.mrb[0].mxu0
    %v1270 = vpop.f32.mrb[0].mxu0
    %v1271 = vpop.f32.mrb[0].mxu0
    %1272 = vdwg.mxu0
    %1273 = vmatprep.subr.bf16.mxu0 %v688
    %1274 = vmatpush1.bf16.xpose.msra.mxu0 %v687
    %1275 = vmatprep.subr.bf16.mxu0 %v747
    %1276 = vmatpush1.bf16.xpose.msra.mxu0 %v746
    %1277 = vmatprep.subr.bf16.mxu0 0
    %1278 = vmatpush1.bf16.xpose.msra.mxu0 0
    %1279 = vmatprep.subr.bf16.mxu0 0
    %1280 = vmatpush1.bf16.xpose.msra.mxu0 0
    %1281 = vmatprep.subr.bf16.mxu0 0
    %1282 = vmatpush1.bf16.xpose.msra.mxu0 0
    %1283 = vmatprep.subr.bf16.mxu0 0
    %1284 = vmatpush1.bf16.xpose.msra.mxu0 0
    %1285 = vmatprep.subr.bf16.mxu0 0
    %1286 = vmatpush1.bf16.xpose.msra.mxu0 0
    %1287 = vmatprep.subr.bf16.mxu0 0
    %1288 = vmatpush1.bf16.xpose.msra.mxu0 0
    %1289 = vmatprep.subr.bf16.mxu0 0
    %1290 = vmatpush1.bf16.xpose.msra.mxu0 0
    %1291 = vmatprep.subr.bf16.mxu0 0
    %1292 = vmatpush1.bf16.xpose.msra.mxu0 0
    %1293 = vmatprep.subr.bf16.mxu0 0
    %1294 = vmatpush1.bf16.xpose.msra.mxu0 0
    %1295 = vmatprep.subr.bf16.mxu0 0
    %1296 = vmatpush1.bf16.xpose.msra.mxu0 0
    %1297 = vmatprep.subr.bf16.mxu0 0
    %1298 = vmatpush1.bf16.xpose.msra.mxu0 0
    %1299 = vmatprep.subr.bf16.mxu0 0
    %1300 = vmatpush1.bf16.xpose.msra.mxu0 0
    %1301 = vmatprep.subr.bf16.mxu0 0
    %1302 = vmatpush1.bf16.xpose.msra.mxu0 0
    %1303 = vmatprep.subr.bf16.mxu0 0
    %1304 = vmatpush1.bf16.xpose.msra.mxu0 0
    %1305 = vmatprep.mubr.bf16.mxu0 %v269
    %1306 = vmatmul.mubr.bf16.gmra.mrb[0].mxu0 %v268
    %v1307 = vpop.f32.mrb[0].mxu0
    %v1308 = vadd.f32 %v1268, %v1307
    %v1309 = vpop.f32.mrb[0].mxu0
    %v1310 = vpop.f32.mrb[0].mxu0
    %v1311 = vpop.f32.mrb[0].mxu0
    %1312 = vdwg.mxu0
    %1313 = vmatprep.subr.bf16.mxu0 %v690
    %1314 = vmatpush1.bf16.xpose.msra.mxu0 %v689
    %1315 = vmatprep.subr.bf16.mxu0 %v749
    %1316 = vmatpush1.bf16.xpose.msra.mxu0 %v748
    %1317 = vmatprep.subr.bf16.mxu0 0
    %1318 = vmatpush1.bf16.xpose.msra.mxu0 0
    %1319 = vmatprep.subr.bf16.mxu0 0
    %1320 = vmatpush1.bf16.xpose.msra.mxu0 0
    %1321 = vmatprep.subr.bf16.mxu0 0
    %1322 = vmatpush1.bf16.xpose.msra.mxu0 0
    %1323 = vmatprep.subr.bf16.mxu0 0
    %1324 = vmatpush1.bf16.xpose.msra.mxu0 0
    %1325 = vmatprep.subr.bf16.mxu0 0
    %1326 = vmatpush1.bf16.xpose.msra.mxu0 0
    %1327 = vmatprep.subr.bf16.mxu0 0
    %1328 = vmatpush1.bf16.xpose.msra.mxu0 0
    %1329 = vmatprep.subr.bf16.mxu0 0
    %1330 = vmatpush1.bf16.xpose.msra.mxu0 0
    %1331 = vmatprep.subr.bf16.mxu0 0
    %1332 = vmatpush1.bf16.xpose.msra.mxu0 0
    %1333 = vmatprep.subr.bf16.mxu0 0
    %1334 = vmatpush1.bf16.xpose.msra.mxu0 0
    %1335 = vmatprep.subr.bf16.mxu0 0
    %1336 = vmatpush1.bf16.xpose.msra.mxu0 0
    %1337 = vmatprep.subr.bf16.mxu0 0
    %1338 = vmatpush1.bf16.xpose.msra.mxu0 0
    %1339 = vmatprep.subr.bf16.mxu0 0
    %1340 = vmatpush1.bf16.xpose.msra.mxu0 0
    %1341 = vmatprep.subr.bf16.mxu0 0
    %1342 = vmatpush1.bf16.xpose.msra.mxu0 0
    %1343 = vmatprep.subr.bf16.mxu0 0
    %1344 = vmatpush1.bf16.xpose.msra.mxu0 0
    %1345 = vmatprep.mubr.bf16.mxu0 %v271
    %1346 = vmatmul.mubr.bf16.gmra.mrb[0].mxu0 %v270
    %v1347 = vpop.f32.mrb[0].mxu0
    %v1348 = vadd.f32 %v1308, %v1347
    %v1349 = vpop.f32.mrb[0].mxu0
    %v1350 = vpop.f32.mrb[0].mxu0
    %v1351 = vpop.f32.mrb[0].mxu0
    %1352 = vdwg.mxu0
    %1353 = vmatprep.subr.bf16.mxu0 %v692
    %1354 = vmatpush1.bf16.xpose.msra.mxu0 %v691
    %1355 = vmatprep.subr.bf16.mxu0 %v751
    %1356 = vmatpush1.bf16.xpose.msra.mxu0 %v750
    %1357 = vmatprep.subr.bf16.mxu0 0
    %1358 = vmatpush1.bf16.xpose.msra.mxu0 0
    %1359 = vmatprep.subr.bf16.mxu0 0
    %1360 = vmatpush1.bf16.xpose.msra.mxu0 0
    %1361 = vmatprep.subr.bf16.mxu0 0
    %1362 = vmatpush1.bf16.xpose.msra.mxu0 0
    %1363 = vmatprep.subr.bf16.mxu0 0
    %1364 = vmatpush1.bf16.xpose.msra.mxu0 0
    %1365 = vmatprep.subr.bf16.mxu0 0
    %1366 = vmatpush1.bf16.xpose.msra.mxu0 0
    %1367 = vmatprep.subr.bf16.mxu0 0
    %1368 = vmatpush1.bf16.xpose.msra.mxu0 0
    %1369 = vmatprep.subr.bf16.mxu0 0
    %1370 = vmatpush1.bf16.xpose.msra.mxu0 0
    %1371 = vmatprep.subr.bf16.mxu0 0
    %1372 = vmatpush1.bf16.xpose.msra.mxu0 0
    %1373 = vmatprep.subr.bf16.mxu0 0
    %1374 = vmatpush1.bf16.xpose.msra.mxu0 0
    %1375 = vmatprep.subr.bf16.mxu0 0
    %1376 = vmatpush1.bf16.xpose.msra.mxu0 0
    %1377 = vmatprep.subr.bf16.mxu0 0
    %1378 = vmatpush1.bf16.xpose.msra.mxu0 0
    %1379 = vmatprep.subr.bf16.mxu0 0
    %1380 = vmatpush1.bf16.xpose.msra.mxu0 0
    %1381 = vmatprep.subr.bf16.mxu0 0
    %1382 = vmatpush1.bf16.xpose.msra.mxu0 0
    %1383 = vmatprep.subr.bf16.mxu0 0
    %1384 = vmatpush1.bf16.xpose.msra.mxu0 0
    %1385 = vmatprep.mubr.bf16.mxu0 %v273
    %1386 = vmatmul.mubr.bf16.gmra.mrb[0].mxu0 %v272
    %v1387 = vpop.f32.mrb[0].mxu0
    %v1388 = vadd.f32 %v1348, %v1387
    %v1389 = vpop.f32.mrb[0].mxu0
    %v1390 = vpop.f32.mrb[0].mxu0
    %v1391 = vpop.f32.mrb[0].mxu0
    %1392 = vdwg.mxu0
    %1393 = vmatprep.subr.bf16.mxu0 %v694
    %1394 = vmatpush1.bf16.xpose.msra.mxu0 %v693
    %1395 = vmatprep.subr.bf16.mxu0 %v753
    %1396 = vmatpush1.bf16.xpose.msra.mxu0 %v752
    %1397 = vmatprep.subr.bf16.mxu0 0
    %1398 = vmatpush1.bf16.xpose.msra.mxu0 0
    %1399 = vmatprep.subr.bf16.mxu0 0
    %1400 = vmatpush1.bf16.xpose.msra.mxu0 0
    %1401 = vmatprep.subr.bf16.mxu0 0
    %1402 = vmatpush1.bf16.xpose.msra.mxu0 0
    %1403 = vmatprep.subr.bf16.mxu0 0
    %1404 = vmatpush1.bf16.xpose.msra.mxu0 0
    %1405 = vmatprep.subr.bf16.mxu0 0
    %1406 = vmatpush1.bf16.xpose.msra.mxu0 0
    %1407 = vmatprep.subr.bf16.mxu0 0
    %1408 = vmatpush1.bf16.xpose.msra.mxu0 0
    %1409 = vmatprep.subr.bf16.mxu0 0
    %1410 = vmatpush1.bf16.xpose.msra.mxu0 0
    %1411 = vmatprep.subr.bf16.mxu0 0
    %1412 = vmatpush1.bf16.xpose.msra.mxu0 0
    %1413 = vmatprep.subr.bf16.mxu0 0
    %1414 = vmatpush1.bf16.xpose.msra.mxu0 0
    %1415 = vmatprep.subr.bf16.mxu0 0
    %1416 = vmatpush1.bf16.xpose.msra.mxu0 0
    %1417 = vmatprep.subr.bf16.mxu0 0
    %1418 = vmatpush1.bf16.xpose.msra.mxu0 0
    %1419 = vmatprep.subr.bf16.mxu0 0
    %1420 = vmatpush1.bf16.xpose.msra.mxu0 0
    %1421 = vmatprep.subr.bf16.mxu0 0
    %1422 = vmatpush1.bf16.xpose.msra.mxu0 0
    %1423 = vmatprep.subr.bf16.mxu0 0
    %1424 = vmatpush1.bf16.xpose.msra.mxu0 0
    %1425 = vmatprep.mubr.bf16.mxu0 %v275
    %1426 = vmatmul.mubr.bf16.gmra.mrb[0].mxu0 %v274
    %v1427 = vpop.f32.mrb[0].mxu0
    %v1428 = vadd.f32 %v1388, %v1427
    %v1429 = vpop.f32.mrb[0].mxu0
    %v1430 = vpop.f32.mrb[0].mxu0
    %v1431 = vpop.f32.mrb[0].mxu0
    %1432 = vdwg.mxu0
    %1433 = vmatprep.subr.bf16.mxu0 %v696
    %1434 = vmatpush1.bf16.xpose.msra.mxu0 %v695
    %1435 = vmatprep.subr.bf16.mxu0 %v755
    %1436 = vmatpush1.bf16.xpose.msra.mxu0 %v754
    %1437 = vmatprep.subr.bf16.mxu0 0
    %1438 = vmatpush1.bf16.xpose.msra.mxu0 0
    %1439 = vmatprep.subr.bf16.mxu0 0
    %1440 = vmatpush1.bf16.xpose.msra.mxu0 0
    %1441 = vmatprep.subr.bf16.mxu0 0
    %1442 = vmatpush1.bf16.xpose.msra.mxu0 0
    %1443 = vmatprep.subr.bf16.mxu0 0
    %1444 = vmatpush1.bf16.xpose.msra.mxu0 0
    %1445 = vmatprep.subr.bf16.mxu0 0
    %1446 = vmatpush1.bf16.xpose.msra.mxu0 0
    %1447 = vmatprep.subr.bf16.mxu0 0
    %1448 = vmatpush1.bf16.xpose.msra.mxu0 0
    %1449 = vmatprep.subr.bf16.mxu0 0
    %1450 = vmatpush1.bf16.xpose.msra.mxu0 0
    %1451 = vmatprep.subr.bf16.mxu0 0
    %1452 = vmatpush1.bf16.xpose.msra.mxu0 0
    %1453 = vmatprep.subr.bf16.mxu0 0
    %1454 = vmatpush1.bf16.xpose.msra.mxu0 0
    %1455 = vmatprep.subr.bf16.mxu0 0
    %1456 = vmatpush1.bf16.xpose.msra.mxu0 0
    %1457 = vmatprep.subr.bf16.mxu0 0
    %1458 = vmatpush1.bf16.xpose.msra.mxu0 0
    %1459 = vmatprep.subr.bf16.mxu0 0
    %1460 = vmatpush1.bf16.xpose.msra.mxu0 0
    %1461 = vmatprep.subr.bf16.mxu0 0
    %1462 = vmatpush1.bf16.xpose.msra.mxu0 0
    %1463 = vmatprep.subr.bf16.mxu0 0
    %1464 = vmatpush1.bf16.xpose.msra.mxu0 0
    %1465 = vmatprep.mubr.bf16.mxu0 %v277
    %1466 = vmatmul.mubr.bf16.gmra.mrb[0].mxu0 %v276
    %v1467 = vpop.f32.mrb[0].mxu0
    %v1468 = vadd.f32 %v1428, %v1467
    %v1469 = vpop.f32.mrb[0].mxu0
    %v1470 = vpop.f32.mrb[0].mxu0
    %v1471 = vpop.f32.mrb[0].mxu0
    %1472 = vdwg.mxu0
    %1473 = vmatprep.subr.bf16.mxu0 %v698
    %1474 = vmatpush1.bf16.xpose.msra.mxu0 %v697
    %1475 = vmatprep.subr.bf16.mxu0 %v757
    %1476 = vmatpush1.bf16.xpose.msra.mxu0 %v756
    %1477 = vmatprep.subr.bf16.mxu0 0
    %1478 = vmatpush1.bf16.xpose.msra.mxu0 0
    %1479 = vmatprep.subr.bf16.mxu0 0
    %1480 = vmatpush1.bf16.xpose.msra.mxu0 0
    %1481 = vmatprep.subr.bf16.mxu0 0
    %1482 = vmatpush1.bf16.xpose.msra.mxu0 0
    %1483 = vmatprep.subr.bf16.mxu0 0
    %1484 = vmatpush1.bf16.xpose.msra.mxu0 0
    %1485 = vmatprep.subr.bf16.mxu0 0
    %1486 = vmatpush1.bf16.xpose.msra.mxu0 0
    %1487 = vmatprep.subr.bf16.mxu0 0
    %1488 = vmatpush1.bf16.xpose.msra.mxu0 0
    %1489 = vmatprep.subr.bf16.mxu0 0
    %1490 = vmatpush1.bf16.xpose.msra.mxu0 0
    %1491 = vmatprep.subr.bf16.mxu0 0
    %1492 = vmatpush1.bf16.xpose.msra.mxu0 0
    %1493 = vmatprep.subr.bf16.mxu0 0
    %1494 = vmatpush1.bf16.xpose.msra.mxu0 0
    %1495 = vmatprep.subr.bf16.mxu0 0
    %1496 = vmatpush1.bf16.xpose.msra.mxu0 0
    %1497 = vmatprep.subr.bf16.mxu0 0
    %1498 = vmatpush1.bf16.xpose.msra.mxu0 0
    %1499 = vmatprep.subr.bf16.mxu0 0
    %1500 = vmatpush1.bf16.xpose.msra.mxu0 0
    %1501 = vmatprep.subr.bf16.mxu0 0
    %1502 = vmatpush1.bf16.xpose.msra.mxu0 0
    %1503 = vmatprep.subr.bf16.mxu0 0
    %1504 = vmatpush1.bf16.xpose.msra.mxu0 0
    %1505 = vmatprep.mubr.bf16.mxu0 %v279
    %1506 = vmatmul.mubr.bf16.gmra.mrb[0].mxu0 %v278
    %v1507 = vpop.f32.mrb[0].mxu0
    %v1508 = vadd.f32 %v1468, %v1507
    %v1509 = vpop.f32.mrb[0].mxu0
    %v1510 = vpop.f32.mrb[0].mxu0
    %v1511 = vpop.f32.mrb[0].mxu0
    %1512 = vdwg.mxu0
    %1513 = vmatprep.subr.bf16.mxu0 %v700
    %1514 = vmatpush1.bf16.xpose.msra.mxu0 %v699
    %1515 = vmatprep.subr.bf16.mxu0 %v759
    %1516 = vmatpush1.bf16.xpose.msra.mxu0 %v758
    %1517 = vmatprep.subr.bf16.mxu0 0
    %1518 = vmatpush1.bf16.xpose.msra.mxu0 0
    %1519 = vmatprep.subr.bf16.mxu0 0
    %1520 = vmatpush1.bf16.xpose.msra.mxu0 0
    %1521 = vmatprep.subr.bf16.mxu0 0
    %1522 = vmatpush1.bf16.xpose.msra.mxu0 0
    %1523 = vmatprep.subr.bf16.mxu0 0
    %1524 = vmatpush1.bf16.xpose.msra.mxu0 0
    %1525 = vmatprep.subr.bf16.mxu0 0
    %1526 = vmatpush1.bf16.xpose.msra.mxu0 0
    %1527 = vmatprep.subr.bf16.mxu0 0
    %1528 = vmatpush1.bf16.xpose.msra.mxu0 0
    %1529 = vmatprep.subr.bf16.mxu0 0
    %1530 = vmatpush1.bf16.xpose.msra.mxu0 0
    %1531 = vmatprep.subr.bf16.mxu0 0
    %1532 = vmatpush1.bf16.xpose.msra.mxu0 0
    %1533 = vmatprep.subr.bf16.mxu0 0
    %1534 = vmatpush1.bf16.xpose.msra.mxu0 0
    %1535 = vmatprep.subr.bf16.mxu0 0
    %1536 = vmatpush1.bf16.xpose.msra.mxu0 0
    %1537 = vmatprep.subr.bf16.mxu0 0
    %1538 = vmatpush1.bf16.xpose.msra.mxu0 0
    %1539 = vmatprep.subr.bf16.mxu0 0
    %1540 = vmatpush1.bf16.xpose.msra.mxu0 0
    %1541 = vmatprep.subr.bf16.mxu0 0
    %1542 = vmatpush1.bf16.xpose.msra.mxu0 0
    %1543 = vmatprep.subr.bf16.mxu0 0
    %1544 = vmatpush1.bf16.xpose.msra.mxu0 0
    %1545 = vmatprep.mubr.bf16.mxu0 %v281
    %1546 = vmatmul.mubr.bf16.gmra.mrb[0].mxu0 %v280
    %v1547 = vpop.f32.mrb[0].mxu0
    %v1548 = vadd.f32 %v1508, %v1547
    %v1549 = vpop.f32.mrb[0].mxu0
    %v1550 = vpop.f32.mrb[0].mxu0
    %v1551 = vpop.f32.mrb[0].mxu0
    %1552 = vdwg.mxu0
    %1553 = vmatprep.subr.bf16.mxu0 %v702
    %1554 = vmatpush1.bf16.xpose.msra.mxu0 %v701
    %1555 = vmatprep.subr.bf16.mxu0 %v761
    %1556 = vmatpush1.bf16.xpose.msra.mxu0 %v760
    %1557 = vmatprep.subr.bf16.mxu0 0
    %1558 = vmatpush1.bf16.xpose.msra.mxu0 0
    %1559 = vmatprep.subr.bf16.mxu0 0
    %1560 = vmatpush1.bf16.xpose.msra.mxu0 0
    %1561 = vmatprep.subr.bf16.mxu0 0
    %1562 = vmatpush1.bf16.xpose.msra.mxu0 0
    %1563 = vmatprep.subr.bf16.mxu0 0
    %1564 = vmatpush1.bf16.xpose.msra.mxu0 0
    %1565 = vmatprep.subr.bf16.mxu0 0
    %1566 = vmatpush1.bf16.xpose.msra.mxu0 0
    %1567 = vmatprep.subr.bf16.mxu0 0
    %1568 = vmatpush1.bf16.xpose.msra.mxu0 0
    %1569 = vmatprep.subr.bf16.mxu0 0
    %1570 = vmatpush1.bf16.xpose.msra.mxu0 0
    %1571 = vmatprep.subr.bf16.mxu0 0
    %1572 = vmatpush1.bf16.xpose.msra.mxu0 0
    %1573 = vmatprep.subr.bf16.mxu0 0
    %1574 = vmatpush1.bf16.xpose.msra.mxu0 0
    %1575 = vmatprep.subr.bf16.mxu0 0
    %1576 = vmatpush1.bf16.xpose.msra.mxu0 0
    %1577 = vmatprep.subr.bf16.mxu0 0
    %1578 = vmatpush1.bf16.xpose.msra.mxu0 0
    %1579 = vmatprep.subr.bf16.mxu0 0
    %1580 = vmatpush1.bf16.xpose.msra.mxu0 0
    %1581 = vmatprep.subr.bf16.mxu0 0
    %1582 = vmatpush1.bf16.xpose.msra.mxu0 0
    %1583 = vmatprep.subr.bf16.mxu0 0
    %1584 = vmatpush1.bf16.xpose.msra.mxu0 0
    %1585 = vmatprep.mubr.bf16.mxu0 %v283
    %1586 = vmatmul.mubr.bf16.gmra.mrb[0].mxu0 %v282
    %v1587 = vpop.f32.mrb[0].mxu0
    %v1588 = vadd.f32 %v1548, %v1587
    %v1589 = vpop.f32.mrb[0].mxu0
    %v1590 = vpop.f32.mrb[0].mxu0
    %v1591 = vpop.f32.mrb[0].mxu0
    %1592 = vdwg.mxu0
    %1593 = vmatprep.subr.bf16.mxu0 %v704
    %1594 = vmatpush1.bf16.xpose.msra.mxu0 %v703
    %1595 = vmatprep.subr.bf16.mxu0 %v763
    %1596 = vmatpush1.bf16.xpose.msra.mxu0 %v762
    %1597 = vmatprep.subr.bf16.mxu0 0
    %1598 = vmatpush1.bf16.xpose.msra.mxu0 0
    %1599 = vmatprep.subr.bf16.mxu0 0
    %1600 = vmatpush1.bf16.xpose.msra.mxu0 0
    %1601 = vmatprep.subr.bf16.mxu0 0
    %1602 = vmatpush1.bf16.xpose.msra.mxu0 0
    %1603 = vmatprep.subr.bf16.mxu0 0
    %1604 = vmatpush1.bf16.xpose.msra.mxu0 0
    %1605 = vmatprep.subr.bf16.mxu0 0
    %1606 = vmatpush1.bf16.xpose.msra.mxu0 0
    %1607 = vmatprep.subr.bf16.mxu0 0
    %1608 = vmatpush1.bf16.xpose.msra.mxu0 0
    %1609 = vmatprep.subr.bf16.mxu0 0
    %1610 = vmatpush1.bf16.xpose.msra.mxu0 0
    %1611 = vmatprep.subr.bf16.mxu0 0
    %1612 = vmatpush1.bf16.xpose.msra.mxu0 0
    %1613 = vmatprep.subr.bf16.mxu0 0
    %1614 = vmatpush1.bf16.xpose.msra.mxu0 0
    %1615 = vmatprep.subr.bf16.mxu0 0
    %1616 = vmatpush1.bf16.xpose.msra.mxu0 0
    %1617 = vmatprep.subr.bf16.mxu0 0
    %1618 = vmatpush1.bf16.xpose.msra.mxu0 0
    %1619 = vmatprep.subr.bf16.mxu0 0
    %1620 = vmatpush1.bf16.xpose.msra.mxu0 0
    %1621 = vmatprep.subr.bf16.mxu0 0
    %1622 = vmatpush1.bf16.xpose.msra.mxu0 0
    %1623 = vmatprep.subr.bf16.mxu0 0
    %1624 = vmatpush1.bf16.xpose.msra.mxu0 0
    %1625 = vmatprep.mubr.bf16.mxu0 %v285
    %1626 = vmatmul.mubr.bf16.gmra.mrb[0].mxu0 %v284
    %v1627 = vpop.f32.mrb[0].mxu0
    %v1628 = vadd.f32 %v1588, %v1627
    %v1629 = vpop.f32.mrb[0].mxu0
    %v1630 = vpop.f32.mrb[0].mxu0
    %v1631 = vpop.f32.mrb[0].mxu0
    %1632 = vdwg.mxu0
    %1633 = vmatprep.subr.bf16.mxu0 %v706
    %1634 = vmatpush1.bf16.xpose.msra.mxu0 %v705
    %1635 = vmatprep.subr.bf16.mxu0 %v765
    %1636 = vmatpush1.bf16.xpose.msra.mxu0 %v764
    %1637 = vmatprep.subr.bf16.mxu0 0
    %1638 = vmatpush1.bf16.xpose.msra.mxu0 0
    %1639 = vmatprep.subr.bf16.mxu0 0
    %1640 = vmatpush1.bf16.xpose.msra.mxu0 0
    %1641 = vmatprep.subr.bf16.mxu0 0
    %1642 = vmatpush1.bf16.xpose.msra.mxu0 0
    %1643 = vmatprep.subr.bf16.mxu0 0
    %1644 = vmatpush1.bf16.xpose.msra.mxu0 0
    %1645 = vmatprep.subr.bf16.mxu0 0
    %1646 = vmatpush1.bf16.xpose.msra.mxu0 0
    %1647 = vmatprep.subr.bf16.mxu0 0
    %1648 = vmatpush1.bf16.xpose.msra.mxu0 0
    %1649 = vmatprep.subr.bf16.mxu0 0
    %1650 = vmatpush1.bf16.xpose.msra.mxu0 0
    %1651 = vmatprep.subr.bf16.mxu0 0
    %1652 = vmatpush1.bf16.xpose.msra.mxu0 0
    %1653 = vmatprep.subr.bf16.mxu0 0
    %1654 = vmatpush1.bf16.xpose.msra.mxu0 0
    %1655 = vmatprep.subr.bf16.mxu0 0
    %1656 = vmatpush1.bf16.xpose.msra.mxu0 0
    %1657 = vmatprep.subr.bf16.mxu0 0
    %1658 = vmatpush1.bf16.xpose.msra.mxu0 0
    %1659 = vmatprep.subr.bf16.mxu0 0
    %1660 = vmatpush1.bf16.xpose.msra.mxu0 0
    %1661 = vmatprep.subr.bf16.mxu0 0
    %1662 = vmatpush1.bf16.xpose.msra.mxu0 0
    %1663 = vmatprep.subr.bf16.mxu0 0
    %1664 = vmatpush1.bf16.xpose.msra.mxu0 0
    %1665 = vmatprep.mubr.bf16.mxu0 %v287
    %1666 = vmatmul.mubr.bf16.gmra.mrb[0].mxu0 %v286
    %v1667 = vpop.f32.mrb[0].mxu0
    %v1668 = vadd.f32 %v1628, %v1667
    %v1669 = vpop.f32.mrb[0].mxu0
    %v1670 = vpop.f32.mrb[0].mxu0
    %v1671 = vpop.f32.mrb[0].mxu0
    %1672 = vdwg.mxu0
    %1673 = vmatprep.subr.bf16.mxu0 %v708
    %1674 = vmatpush1.bf16.xpose.msra.mxu0 %v707
    %1675 = vmatprep.subr.bf16.mxu0 %v767
    %1676 = vmatpush1.bf16.xpose.msra.mxu0 %v766
    %1677 = vmatprep.subr.bf16.mxu0 0
    %1678 = vmatpush1.bf16.xpose.msra.mxu0 0
    %1679 = vmatprep.subr.bf16.mxu0 0
    %1680 = vmatpush1.bf16.xpose.msra.mxu0 0
    %1681 = vmatprep.subr.bf16.mxu0 0
    %1682 = vmatpush1.bf16.xpose.msra.mxu0 0
    %1683 = vmatprep.subr.bf16.mxu0 0
    %1684 = vmatpush1.bf16.xpose.msra.mxu0 0
    %1685 = vmatprep.subr.bf16.mxu0 0
    %1686 = vmatpush1.bf16.xpose.msra.mxu0 0
    %1687 = vmatprep.subr.bf16.mxu0 0
    %1688 = vmatpush1.bf16.xpose.msra.mxu0 0
    %1689 = vmatprep.subr.bf16.mxu0 0
    %1690 = vmatpush1.bf16.xpose.msra.mxu0 0
    %1691 = vmatprep.subr.bf16.mxu0 0
    %1692 = vmatpush1.bf16.xpose.msra.mxu0 0
    %1693 = vmatprep.subr.bf16.mxu0 0
    %1694 = vmatpush1.bf16.xpose.msra.mxu0 0
    %1695 = vmatprep.subr.bf16.mxu0 0
    %1696 = vmatpush1.bf16.xpose.msra.mxu0 0
    %1697 = vmatprep.subr.bf16.mxu0 0
    %1698 = vmatpush1.bf16.xpose.msra.mxu0 0
    %1699 = vmatprep.subr.bf16.mxu0 0
    %1700 = vmatpush1.bf16.xpose.msra.mxu0 0
    %1701 = vmatprep.subr.bf16.mxu0 0
    %1702 = vmatpush1.bf16.xpose.msra.mxu0 0
    %1703 = vmatprep.subr.bf16.mxu0 0
    %1704 = vmatpush1.bf16.xpose.msra.mxu0 0
    %1705 = vmatprep.mubr.bf16.mxu0 %v289
    %1706 = vmatmul.mubr.bf16.gmra.mrb[0].mxu0 %v288
    %v1707 = vpop.f32.mrb[0].mxu0
    %v1708 = vadd.f32 %v1668, %v1707
    %v1709 = vpop.f32.mrb[0].mxu0
    %v1710 = vpop.f32.mrb[0].mxu0
    %v1711 = vpop.f32.mrb[0].mxu0
    %1712 = vdwg.mxu0
    %1713 = vmatprep.subr.bf16.mxu0 %v710
    %1714 = vmatpush1.bf16.xpose.msra.mxu0 %v709
    %1715 = vmatprep.subr.bf16.mxu0 %v769
    %1716 = vmatpush1.bf16.xpose.msra.mxu0 %v768
    %1717 = vmatprep.subr.bf16.mxu0 0
    %1718 = vmatpush1.bf16.xpose.msra.mxu0 0
    %1719 = vmatprep.subr.bf16.mxu0 0
    %1720 = vmatpush1.bf16.xpose.msra.mxu0 0
    %1721 = vmatprep.subr.bf16.mxu0 0
    %1722 = vmatpush1.bf16.xpose.msra.mxu0 0
    %1723 = vmatprep.subr.bf16.mxu0 0
    %1724 = vmatpush1.bf16.xpose.msra.mxu0 0
    %1725 = vmatprep.subr.bf16.mxu0 0
    %1726 = vmatpush1.bf16.xpose.msra.mxu0 0
    %1727 = vmatprep.subr.bf16.mxu0 0
    %1728 = vmatpush1.bf16.xpose.msra.mxu0 0
    %1729 = vmatprep.subr.bf16.mxu0 0
    %1730 = vmatpush1.bf16.xpose.msra.mxu0 0
    %1731 = vmatprep.subr.bf16.mxu0 0
    %1732 = vmatpush1.bf16.xpose.msra.mxu0 0
    %1733 = vmatprep.subr.bf16.mxu0 0
    %1734 = vmatpush1.bf16.xpose.msra.mxu0 0
    %1735 = vmatprep.subr.bf16.mxu0 0
    %1736 = vmatpush1.bf16.xpose.msra.mxu0 0
    %1737 = vmatprep.subr.bf16.mxu0 0
    %1738 = vmatpush1.bf16.xpose.msra.mxu0 0
    %1739 = vmatprep.subr.bf16.mxu0 0
    %1740 = vmatpush1.bf16.xpose.msra.mxu0 0
    %1741 = vmatprep.subr.bf16.mxu0 0
    %1742 = vmatpush1.bf16.xpose.msra.mxu0 0
    %1743 = vmatprep.subr.bf16.mxu0 0
    %1744 = vmatpush1.bf16.xpose.msra.mxu0 0
    %1745 = vmatprep.mubr.bf16.mxu0 %v291
    %1746 = vmatmul.mubr.bf16.gmra.mrb[0].mxu0 %v290
    %v1747 = vpop.f32.mrb[0].mxu0
    %v1748 = vadd.f32 %v1708, %v1747
    %v1749 = vpop.f32.mrb[0].mxu0
    %v1750 = vpop.f32.mrb[0].mxu0
    %v1751 = vpop.f32.mrb[0].mxu0
    %1752 = vdwg.mxu0
    %1753 = vmatprep.subr.bf16.mxu0 %v712
    %1754 = vmatpush1.bf16.xpose.msra.mxu0 %v711
    %1755 = vmatprep.subr.bf16.mxu0 %v771
    %1756 = vmatpush1.bf16.xpose.msra.mxu0 %v770
    %1757 = vmatprep.subr.bf16.mxu0 0
    %1758 = vmatpush1.bf16.xpose.msra.mxu0 0
    %1759 = vmatprep.subr.bf16.mxu0 0
    %1760 = vmatpush1.bf16.xpose.msra.mxu0 0
    %1761 = vmatprep.subr.bf16.mxu0 0
    %1762 = vmatpush1.bf16.xpose.msra.mxu0 0
    %1763 = vmatprep.subr.bf16.mxu0 0
    %1764 = vmatpush1.bf16.xpose.msra.mxu0 0
    %1765 = vmatprep.subr.bf16.mxu0 0
    %1766 = vmatpush1.bf16.xpose.msra.mxu0 0
    %1767 = vmatprep.subr.bf16.mxu0 0
    %1768 = vmatpush1.bf16.xpose.msra.mxu0 0
    %1769 = vmatprep.subr.bf16.mxu0 0
    %1770 = vmatpush1.bf16.xpose.msra.mxu0 0
    %1771 = vmatprep.subr.bf16.mxu0 0
    %1772 = vmatpush1.bf16.xpose.msra.mxu0 0
    %1773 = vmatprep.subr.bf16.mxu0 0
    %1774 = vmatpush1.bf16.xpose.msra.mxu0 0
    %1775 = vmatprep.subr.bf16.mxu0 0
    %1776 = vmatpush1.bf16.xpose.msra.mxu0 0
    %1777 = vmatprep.subr.bf16.mxu0 0
    %1778 = vmatpush1.bf16.xpose.msra.mxu0 0
    %1779 = vmatprep.subr.bf16.mxu0 0
    %1780 = vmatpush1.bf16.xpose.msra.mxu0 0
    %1781 = vmatprep.subr.bf16.mxu0 0
    %1782 = vmatpush1.bf16.xpose.msra.mxu0 0
    %1783 = vmatprep.subr.bf16.mxu0 0
    %1784 = vmatpush1.bf16.xpose.msra.mxu0 0
    %1785 = vmatprep.mubr.bf16.mxu0 %v293
    %1786 = vmatmul.mubr.bf16.gmra.mrb[0].mxu0 %v292
    %v1787 = vpop.f32.mrb[0].mxu0
    %v1788 = vadd.f32 %v1748, %v1787
    %v1789 = vpop.f32.mrb[0].mxu0
    %v1790 = vpop.f32.mrb[0].mxu0
    %v1791 = vpop.f32.mrb[0].mxu0
    %1792 = vdwg.mxu0
    %1793 = vmatprep.subr.bf16.mxu0 %v714
    %1794 = vmatpush1.bf16.xpose.msra.mxu0 %v713
    %1795 = vmatprep.subr.bf16.mxu0 %v773
    %1796 = vmatpush1.bf16.xpose.msra.mxu0 %v772
    %1797 = vmatprep.subr.bf16.mxu0 0
    %1798 = vmatpush1.bf16.xpose.msra.mxu0 0
    %1799 = vmatprep.subr.bf16.mxu0 0
    %1800 = vmatpush1.bf16.xpose.msra.mxu0 0
    %1801 = vmatprep.subr.bf16.mxu0 0
    %1802 = vmatpush1.bf16.xpose.msra.mxu0 0
    %1803 = vmatprep.subr.bf16.mxu0 0
    %1804 = vmatpush1.bf16.xpose.msra.mxu0 0
    %1805 = vmatprep.subr.bf16.mxu0 0
    %1806 = vmatpush1.bf16.xpose.msra.mxu0 0
    %1807 = vmatprep.subr.bf16.mxu0 0
    %1808 = vmatpush1.bf16.xpose.msra.mxu0 0
    %1809 = vmatprep.subr.bf16.mxu0 0
    %1810 = vmatpush1.bf16.xpose.msra.mxu0 0
    %1811 = vmatprep.subr.bf16.mxu0 0
    %1812 = vmatpush1.bf16.xpose.msra.mxu0 0
    %1813 = vmatprep.subr.bf16.mxu0 0
    %1814 = vmatpush1.bf16.xpose.msra.mxu0 0
    %1815 = vmatprep.subr.bf16.mxu0 0
    %1816 = vmatpush1.bf16.xpose.msra.mxu0 0
    %1817 = vmatprep.subr.bf16.mxu0 0
    %1818 = vmatpush1.bf16.xpose.msra.mxu0 0
    %1819 = vmatprep.subr.bf16.mxu0 0
    %1820 = vmatpush1.bf16.xpose.msra.mxu0 0
    %1821 = vmatprep.subr.bf16.mxu0 0
    %1822 = vmatpush1.bf16.xpose.msra.mxu0 0
    %1823 = vmatprep.subr.bf16.mxu0 0
    %1824 = vmatpush1.bf16.xpose.msra.mxu0 0
    %1825 = vmatprep.mubr.bf16.mxu0 %v295
    %1826 = vmatmul.mubr.bf16.gmra.mrb[0].mxu0 %v294
    %v1827 = vpop.f32.mrb[0].mxu0
    %v1828 = vadd.f32 %v1788, %v1827
    %v1829 = vpop.f32.mrb[0].mxu0
    %v1830 = vpop.f32.mrb[0].mxu0
    %v1831 = vpop.f32.mrb[0].mxu0
    %1832 = vdwg.mxu0
    %1833 = vmatprep.subr.bf16.mxu0 %v716
    %1834 = vmatpush1.bf16.xpose.msra.mxu0 %v715
    %1835 = vmatprep.subr.bf16.mxu0 %v775
    %1836 = vmatpush1.bf16.xpose.msra.mxu0 %v774
    %1837 = vmatprep.subr.bf16.mxu0 0
    %1838 = vmatpush1.bf16.xpose.msra.mxu0 0
    %1839 = vmatprep.subr.bf16.mxu0 0
    %1840 = vmatpush1.bf16.xpose.msra.mxu0 0
    %1841 = vmatprep.subr.bf16.mxu0 0
    %1842 = vmatpush1.bf16.xpose.msra.mxu0 0
    %1843 = vmatprep.subr.bf16.mxu0 0
    %1844 = vmatpush1.bf16.xpose.msra.mxu0 0
    %1845 = vmatprep.subr.bf16.mxu0 0
    %1846 = vmatpush1.bf16.xpose.msra.mxu0 0
    %1847 = vmatprep.subr.bf16.mxu0 0
    %1848 = vmatpush1.bf16.xpose.msra.mxu0 0
    %1849 = vmatprep.subr.bf16.mxu0 0
    %1850 = vmatpush1.bf16.xpose.msra.mxu0 0
    %1851 = vmatprep.subr.bf16.mxu0 0
    %1852 = vmatpush1.bf16.xpose.msra.mxu0 0
    %1853 = vmatprep.subr.bf16.mxu0 0
    %1854 = vmatpush1.bf16.xpose.msra.mxu0 0
    %1855 = vmatprep.subr.bf16.mxu0 0
    %1856 = vmatpush1.bf16.xpose.msra.mxu0 0
    %1857 = vmatprep.subr.bf16.mxu0 0
    %1858 = vmatpush1.bf16.xpose.msra.mxu0 0
    %1859 = vmatprep.subr.bf16.mxu0 0
    %1860 = vmatpush1.bf16.xpose.msra.mxu0 0
    %1861 = vmatprep.subr.bf16.mxu0 0
    %1862 = vmatpush1.bf16.xpose.msra.mxu0 0
    %1863 = vmatprep.subr.bf16.mxu0 0
    %1864 = vmatpush1.bf16.xpose.msra.mxu0 0
    %1865 = vmatprep.mubr.bf16.mxu0 %v297
    %1866 = vmatmul.mubr.bf16.gmra.mrb[0].mxu0 %v296
    %v1867 = vpop.f32.mrb[0].mxu0
    %v1868 = vadd.f32 %v1828, %v1867
    %v1869 = vpop.f32.mrb[0].mxu0
    %v1870 = vpop.f32.mrb[0].mxu0
    %v1871 = vpop.f32.mrb[0].mxu0
    %1872 = vdwg.mxu0
    %1873 = vmatprep.subr.bf16.mxu0 %v718
    %1874 = vmatpush1.bf16.xpose.msra.mxu0 %v717
    %1875 = vmatprep.subr.bf16.mxu0 %v777
    %1876 = vmatpush1.bf16.xpose.msra.mxu0 %v776
    %1877 = vmatprep.subr.bf16.mxu0 0
    %1878 = vmatpush1.bf16.xpose.msra.mxu0 0
    %1879 = vmatprep.subr.bf16.mxu0 0
    %1880 = vmatpush1.bf16.xpose.msra.mxu0 0
    %1881 = vmatprep.subr.bf16.mxu0 0
    %1882 = vmatpush1.bf16.xpose.msra.mxu0 0
    %1883 = vmatprep.subr.bf16.mxu0 0
    %1884 = vmatpush1.bf16.xpose.msra.mxu0 0
    %1885 = vmatprep.subr.bf16.mxu0 0
    %1886 = vmatpush1.bf16.xpose.msra.mxu0 0
    %1887 = vmatprep.subr.bf16.mxu0 0
    %1888 = vmatpush1.bf16.xpose.msra.mxu0 0
    %1889 = vmatprep.subr.bf16.mxu0 0
    %1890 = vmatpush1.bf16.xpose.msra.mxu0 0
    %1891 = vmatprep.subr.bf16.mxu0 0
    %1892 = vmatpush1.bf16.xpose.msra.mxu0 0
    %1893 = vmatprep.subr.bf16.mxu0 0
    %1894 = vmatpush1.bf16.xpose.msra.mxu0 0
    %1895 = vmatprep.subr.bf16.mxu0 0
    %1896 = vmatpush1.bf16.xpose.msra.mxu0 0
    %1897 = vmatprep.subr.bf16.mxu0 0
    %1898 = vmatpush1.bf16.xpose.msra.mxu0 0
    %1899 = vmatprep.subr.bf16.mxu0 0
    %1900 = vmatpush1.bf16.xpose.msra.mxu0 0
    %1901 = vmatprep.subr.bf16.mxu0 0
    %1902 = vmatpush1.bf16.xpose.msra.mxu0 0
    %1903 = vmatprep.subr.bf16.mxu0 0
    %1904 = vmatpush1.bf16.xpose.msra.mxu0 0
    %1905 = vmatprep.mubr.bf16.mxu0 %v299
    %1906 = vmatmul.mubr.bf16.gmra.mrb[0].mxu0 %v298
    %v1907 = vpop.f32.mrb[0].mxu0
    %v1908 = vadd.f32 %v1868, %v1907
    %v1909 = vpop.f32.mrb[0].mxu0
    %v1910 = vpop.f32.mrb[0].mxu0
    %v1911 = vpop.f32.mrb[0].mxu0
    %1912 = vdwg.mxu0
    %1913 = vmatprep.subr.bf16.mxu0 %v720
    %1914 = vmatpush1.bf16.xpose.msra.mxu0 %v719
    %1915 = vmatprep.subr.bf16.mxu0 %v779
    %1916 = vmatpush1.bf16.xpose.msra.mxu0 %v778
    %1917 = vmatprep.subr.bf16.mxu0 0
    %1918 = vmatpush1.bf16.xpose.msra.mxu0 0
    %1919 = vmatprep.subr.bf16.mxu0 0
    %1920 = vmatpush1.bf16.xpose.msra.mxu0 0
    %1921 = vmatprep.subr.bf16.mxu0 0
    %1922 = vmatpush1.bf16.xpose.msra.mxu0 0
    %1923 = vmatprep.subr.bf16.mxu0 0
    %1924 = vmatpush1.bf16.xpose.msra.mxu0 0
    %1925 = vmatprep.subr.bf16.mxu0 0
    %1926 = vmatpush1.bf16.xpose.msra.mxu0 0
    %1927 = vmatprep.subr.bf16.mxu0 0
    %1928 = vmatpush1.bf16.xpose.msra.mxu0 0
    %1929 = vmatprep.subr.bf16.mxu0 0
    %1930 = vmatpush1.bf16.xpose.msra.mxu0 0
    %1931 = vmatprep.subr.bf16.mxu0 0
    %1932 = vmatpush1.bf16.xpose.msra.mxu0 0
    %1933 = vmatprep.subr.bf16.mxu0 0
    %1934 = vmatpush1.bf16.xpose.msra.mxu0 0
    %1935 = vmatprep.subr.bf16.mxu0 0
    %1936 = vmatpush1.bf16.xpose.msra.mxu0 0
    %1937 = vmatprep.subr.bf16.mxu0 0
    %1938 = vmatpush1.bf16.xpose.msra.mxu0 0
    %1939 = vmatprep.subr.bf16.mxu0 0
    %1940 = vmatpush1.bf16.xpose.msra.mxu0 0
    %1941 = vmatprep.subr.bf16.mxu0 0
    %1942 = vmatpush1.bf16.xpose.msra.mxu0 0
    %1943 = vmatprep.subr.bf16.mxu0 0
    %1944 = vmatpush1.bf16.xpose.msra.mxu0 0
    %1945 = vmatprep.mubr.bf16.mxu0 %v301
    %1946 = vmatmul.mubr.bf16.gmra.mrb[0].mxu0 %v300
    %v1947 = vpop.f32.mrb[0].mxu0
    %v1948 = vadd.f32 %v1908, %v1947
    %v1949 = vpop.f32.mrb[0].mxu0
    %v1950 = vpop.f32.mrb[0].mxu0
    %v1951 = vpop.f32.mrb[0].mxu0
    %1952 = vdwg.mxu0
    %1953 = vmatprep.subr.bf16.mxu0 %v722
    %1954 = vmatpush1.bf16.xpose.msra.mxu0 %v721
    %1955 = vmatprep.subr.bf16.mxu0 %v781
    %1956 = vmatpush1.bf16.xpose.msra.mxu0 %v780
    %1957 = vmatprep.subr.bf16.mxu0 0
    %1958 = vmatpush1.bf16.xpose.msra.mxu0 0
    %1959 = vmatprep.subr.bf16.mxu0 0
    %1960 = vmatpush1.bf16.xpose.msra.mxu0 0
    %1961 = vmatprep.subr.bf16.mxu0 0
    %1962 = vmatpush1.bf16.xpose.msra.mxu0 0
    %1963 = vmatprep.subr.bf16.mxu0 0
    %1964 = vmatpush1.bf16.xpose.msra.mxu0 0
    %1965 = vmatprep.subr.bf16.mxu0 0
    %1966 = vmatpush1.bf16.xpose.msra.mxu0 0
    %1967 = vmatprep.subr.bf16.mxu0 0
    %1968 = vmatpush1.bf16.xpose.msra.mxu0 0
    %1969 = vmatprep.subr.bf16.mxu0 0
    %1970 = vmatpush1.bf16.xpose.msra.mxu0 0
    %1971 = vmatprep.subr.bf16.mxu0 0
    %1972 = vmatpush1.bf16.xpose.msra.mxu0 0
    %1973 = vmatprep.subr.bf16.mxu0 0
    %1974 = vmatpush1.bf16.xpose.msra.mxu0 0
    %1975 = vmatprep.subr.bf16.mxu0 0
    %1976 = vmatpush1.bf16.xpose.msra.mxu0 0
    %1977 = vmatprep.subr.bf16.mxu0 0
    %1978 = vmatpush1.bf16.xpose.msra.mxu0 0
    %1979 = vmatprep.subr.bf16.mxu0 0
    %1980 = vmatpush1.bf16.xpose.msra.mxu0 0
    %1981 = vmatprep.subr.bf16.mxu0 0
    %1982 = vmatpush1.bf16.xpose.msra.mxu0 0
    %1983 = vmatprep.subr.bf16.mxu0 0
    %1984 = vmatpush1.bf16.xpose.msra.mxu0 0
    %1985 = vmatprep.mubr.bf16.mxu0 %v303
    %1986 = vmatmul.mubr.bf16.gmra.mrb[0].mxu0 %v302
    %v1987 = vpop.f32.mrb[0].mxu0
    %v1988 = vadd.f32 %v1948, %v1987
    %v1989 = vpop.f32.mrb[0].mxu0
    %v1990 = vpop.f32.mrb[0].mxu0
    %v1991 = vpop.f32.mrb[0].mxu0
    %1992 = vdwg.mxu0
    %1993 = vmatprep.subr.bf16.mxu0 %v724
    %1994 = vmatpush1.bf16.xpose.msra.mxu0 %v723
    %1995 = vmatprep.subr.bf16.mxu0 %v783
    %1996 = vmatpush1.bf16.xpose.msra.mxu0 %v782
    %1997 = vmatprep.subr.bf16.mxu0 0
    %1998 = vmatpush1.bf16.xpose.msra.mxu0 0
    %1999 = vmatprep.subr.bf16.mxu0 0
    %2000 = vmatpush1.bf16.xpose.msra.mxu0 0
    %2001 = vmatprep.subr.bf16.mxu0 0
    %2002 = vmatpush1.bf16.xpose.msra.mxu0 0
    %2003 = vmatprep.subr.bf16.mxu0 0
    %2004 = vmatpush1.bf16.xpose.msra.mxu0 0
    %2005 = vmatprep.subr.bf16.mxu0 0
    %2006 = vmatpush1.bf16.xpose.msra.mxu0 0
    %2007 = vmatprep.subr.bf16.mxu0 0
    %2008 = vmatpush1.bf16.xpose.msra.mxu0 0
    %2009 = vmatprep.subr.bf16.mxu0 0
    %2010 = vmatpush1.bf16.xpose.msra.mxu0 0
    %2011 = vmatprep.subr.bf16.mxu0 0
    %2012 = vmatpush1.bf16.xpose.msra.mxu0 0
    %2013 = vmatprep.subr.bf16.mxu0 0
    %2014 = vmatpush1.bf16.xpose.msra.mxu0 0
    %2015 = vmatprep.subr.bf16.mxu0 0
    %2016 = vmatpush1.bf16.xpose.msra.mxu0 0
    %2017 = vmatprep.subr.bf16.mxu0 0
    %2018 = vmatpush1.bf16.xpose.msra.mxu0 0
    %2019 = vmatprep.subr.bf16.mxu0 0
    %2020 = vmatpush1.bf16.xpose.msra.mxu0 0
    %2021 = vmatprep.subr.bf16.mxu0 0
    %2022 = vmatpush1.bf16.xpose.msra.mxu0 0
    %2023 = vmatprep.subr.bf16.mxu0 0
    %2024 = vmatpush1.bf16.xpose.msra.mxu0 0
    %2025 = vmatprep.mubr.bf16.mxu0 %v305
    %2026 = vmatmul.mubr.bf16.gmra.mrb[0].mxu0 %v304
    %v2027 = vpop.f32.mrb[0].mxu0
    %v2028 = vadd.f32 %v1988, %v2027
    %v2029 = vpop.f32.mrb[0].mxu0
    %v2030 = vpop.f32.mrb[0].mxu0
    %v2031 = vpop.f32.mrb[0].mxu0
    %2032 = vdwg.mxu0
    %2033 = vmatprep.subr.bf16.mxu0 %v726
    %2034 = vmatpush1.bf16.xpose.msra.mxu0 %v725
    %2035 = vmatprep.subr.bf16.mxu0 %v785
    %2036 = vmatpush1.bf16.xpose.msra.mxu0 %v784
    %2037 = vmatprep.subr.bf16.mxu0 0
    %2038 = vmatpush1.bf16.xpose.msra.mxu0 0
    %2039 = vmatprep.subr.bf16.mxu0 0
    %2040 = vmatpush1.bf16.xpose.msra.mxu0 0
    %2041 = vmatprep.subr.bf16.mxu0 0
    %2042 = vmatpush1.bf16.xpose.msra.mxu0 0
    %2043 = vmatprep.subr.bf16.mxu0 0
    %2044 = vmatpush1.bf16.xpose.msra.mxu0 0
    %2045 = vmatprep.subr.bf16.mxu0 0
    %2046 = vmatpush1.bf16.xpose.msra.mxu0 0
    %2047 = vmatprep.subr.bf16.mxu0 0
    %2048 = vmatpush1.bf16.xpose.msra.mxu0 0
    %2049 = vmatprep.subr.bf16.mxu0 0
    %2050 = vmatpush1.bf16.xpose.msra.mxu0 0
    %2051 = vmatprep.subr.bf16.mxu0 0
    %2052 = vmatpush1.bf16.xpose.msra.mxu0 0
    %2053 = vmatprep.subr.bf16.mxu0 0
    %2054 = vmatpush1.bf16.xpose.msra.mxu0 0
    %2055 = vmatprep.subr.bf16.mxu0 0
    %2056 = vmatpush1.bf16.xpose.msra.mxu0 0
    %2057 = vmatprep.subr.bf16.mxu0 0
    %2058 = vmatpush1.bf16.xpose.msra.mxu0 0
    %2059 = vmatprep.subr.bf16.mxu0 0
    %2060 = vmatpush1.bf16.xpose.msra.mxu0 0
    %2061 = vmatprep.subr.bf16.mxu0 0
    %2062 = vmatpush1.bf16.xpose.msra.mxu0 0
    %2063 = vmatprep.subr.bf16.mxu0 0
    %2064 = vmatpush1.bf16.xpose.msra.mxu0 0
    %2065 = vmatprep.mubr.bf16.mxu0 %v307
    %2066 = vmatmul.mubr.bf16.gmra.mrb[0].mxu0 %v306
    %v2067 = vpop.f32.mrb[0].mxu0
    %v2068 = vadd.f32 %v2028, %v2067
    %v2069 = vpop.f32.mrb[0].mxu0
    %v2070 = vpop.f32.mrb[0].mxu0
    %v2071 = vpop.f32.mrb[0].mxu0
    %2072 = vdwg.mxu0
    %2073 = vmatprep.subr.bf16.mxu0 0
    %2074 = vmatpush1.bf16.xpose.msra.mxu0 %v908
    %2075 = vmatprep.subr.bf16.mxu0 0
    %2076 = vmatpush1.bf16.xpose.msra.mxu0 %v911
    %2077 = vmatprep.subr.bf16.mxu0 0
    %2078 = vmatpush1.bf16.xpose.msra.mxu0 0
    %2079 = vmatprep.subr.bf16.mxu0 0
    %2080 = vmatpush1.bf16.xpose.msra.mxu0 0
    %2081 = vmatprep.subr.bf16.mxu0 0
    %2082 = vmatpush1.bf16.xpose.msra.mxu0 0
    %2083 = vmatprep.subr.bf16.mxu0 0
    %2084 = vmatpush1.bf16.xpose.msra.mxu0 0
    %2085 = vmatprep.subr.bf16.mxu0 0
    %2086 = vmatpush1.bf16.xpose.msra.mxu0 0
    %2087 = vmatprep.subr.bf16.mxu0 0
    %2088 = vmatpush1.bf16.xpose.msra.mxu0 0
    %2089 = vmatprep.subr.bf16.mxu0 0
    %2090 = vmatpush1.bf16.xpose.msra.mxu0 0
    %2091 = vmatprep.subr.bf16.mxu0 0
    %2092 = vmatpush1.bf16.xpose.msra.mxu0 0
    %2093 = vmatprep.subr.bf16.mxu0 0
    %2094 = vmatpush1.bf16.xpose.msra.mxu0 0
    %2095 = vmatprep.subr.bf16.mxu0 0
    %2096 = vmatpush1.bf16.xpose.msra.mxu0 0
    %2097 = vmatprep.subr.bf16.mxu0 0
    %2098 = vmatpush1.bf16.xpose.msra.mxu0 0
    %2099 = vmatprep.subr.bf16.mxu0 0
    %2100 = vmatpush1.bf16.xpose.msra.mxu0 0
    %2101 = vmatprep.subr.bf16.mxu0 0
    %2102 = vmatpush1.bf16.xpose.msra.mxu0 0
    %2103 = vmatprep.subr.bf16.mxu0 0
    %2104 = vmatpush1.bf16.xpose.msra.mxu0 0
    %2105 = vmatprep.mubr.bf16.mxu0 0
    %2106 = vmatmul.mubr.bf16.gmra.mrb[0].mxu0 %v905
    %v2107 = vpop.f32.mrb[0].mxu0
    %v2108 = vadd.f32 %v2068, %v2107
    %v2109 = vpop.f32.mrb[0].mxu0
    %v2110 = vpop.f32.mrb[0].mxu0
    %v2111 = vpop.f32.mrb[0].mxu0
    %2112 = vdwg.mxu0
    %vm2113 = vcmask 261120
    %v2114 = vsel %vm2113, %v2108, 0.0
    %v2115 = vrot.slane %v2114, 4
    %v2116 = vadd.f32 %v2114, %v2115
    %v2117 = vrot.slane %v2116, 2
    %v2118 = vadd.f32 %v2116, %v2117
    %v2119 = vrot.slane %v2118, 1
    %v2120 = vadd.f32 %v2118, %v2119
    %v2121 = vrcp.pop 8.0
    %v2122 = vmul.f32 %v2120, %v2121
    %v2123 = vsub.f32 %v2108, %v2122
    %v2124 = vmul.f32 %v2123, %v2123
    %v2125 = vsel %vm2113, %v2124, 0.0
    %v2126 = vrot.slane %v2125, 4
    %v2127 = vadd.f32 %v2125, %v2126
    %v2128 = vrot.slane %v2127, 2
    %v2129 = vadd.f32 %v2127, %v2128
    %v2130 = vrot.slane %v2129, 1
    %v2131 = vadd.f32 %v2129, %v2130
    %v2132 = vmul.f32 %v2131, %v2121
    %v2133 = vadd.f32 %v2132, 1e-05
    %v2134 = vrsqrt.pop %v2133
    %v2135 = vmul.f32 %v2123, %v2134
    %v2136 = vlaneseq
    %v2137 = vshrl.u32 %v2136, 7
    %v2138 = vsub.s32 1, %v2137
    %v2139 = vrot.slane %v247, %v2138
    %v2140 = vmul.f32 %v2135, %v2139
    %v2141 = vlaneseq
    %v2142 = vshrl.u32 %v2141, 7
    %v2143 = vsub.s32 2, %v2142
    %v2144 = vrot.slane %v247, %v2143
    %v2145 = vadd.f32 %v2140, %v2144
    %v2146 = vtanh.pop %v2145
    %v2147 = vlaneseq
    %v2148 = vshrl.u32 %v2147, 7
    %v2149 = vsub.s32 0, %v2148
    %v2150 = vrot.slane %v248, %v2149
    %v2152 = vsel %vm2113, %v2146, 0
    %2154 = vmatprep.subr.mxu0 0.0
    %2155 = vmatpush1.msra.mxu0 %v234
    %2156 = vmatprep.subr.mxu0 0.0
    %2157 = vmatpush1.msra.mxu0 %v235
    %2158 = vmatprep.subr.mxu0 0.0
    %2159 = vmatpush1.msra.mxu0 %v236
    %2160 = vmatprep.subr.mxu0 0.0
    %2161 = vmatpush1.msra.mxu0 %v237
    %2162 = vmatprep.subr.mxu0 0.0
    %2163 = vmatpush1.msra.mxu0 0.0
    %2164 = vmatprep.subr.mxu0 0.0
    %2165 = vmatpush1.msra.mxu0 0.0
    %2166 = vmatprep.subr.mxu0 0.0
    %2167 = vmatpush1.msra.mxu0 0.0
    %2168 = vmatprep.subr.mxu0 0.0
    %2169 = vmatpush1.msra.mxu0 0.0
    %2170 = vmatprep.subr.mxu0 0.0
    %2171 = vmatpush1.msra.mxu0 0.0
    %2172 = vmatprep.subr.mxu0 0.0
    %2173 = vmatpush1.msra.mxu0 0.0
    %2174 = vmatprep.subr.mxu0 0.0
    %2175 = vmatpush1.msra.mxu0 0.0
    %2176 = vmatprep.subr.mxu0 0.0
    %2177 = vmatpush1.msra.mxu0 0.0
    %2178 = vmatprep.subr.mxu0 0.0
    %2179 = vmatpush1.msra.mxu0 0.0
    %2180 = vmatprep.subr.mxu0 0.0
    %2181 = vmatpush1.msra.mxu0 0.0
    %2182 = vmatprep.subr.mxu0 0.0
    %2183 = vmatpush1.msra.mxu0 0.0
    %2184 = vmatprep.subr.mxu0 0.0
    %2185 = vmatpush1.msra.mxu0 0.0
    %2186 = vmatprep.subr.mxu0 0.0
    %2187 = vmatpush1.msra.mxu0 0.0
    %2188 = vmatprep.subr.mxu0 0.0
    %2189 = vmatpush1.msra.mxu0 0.0
    %2190 = vmatprep.subr.mxu0 0.0
    %2191 = vmatpush1.msra.mxu0 0.0
    %2192 = vmatprep.subr.mxu0 0.0
    %2193 = vmatpush1.msra.mxu0 0.0
    %2194 = vmatprep.subr.mxu0 0.0
    %2195 = vmatpush1.msra.mxu0 0.0
    %2196 = vmatprep.subr.mxu0 0.0
    %2197 = vmatpush1.msra.mxu0 0.0
    %2198 = vmatprep.subr.mxu0 0.0
    %2199 = vmatpush1.msra.mxu0 0.0
    %2200 = vmatprep.subr.mxu0 0.0
    %2201 = vmatpush1.msra.mxu0 0.0
    %2202 = vmatprep.subr.mxu0 0.0
    %2203 = vmatpush1.msra.mxu0 0.0
    %2204 = vmatprep.subr.mxu0 0.0
    %2205 = vmatpush1.msra.mxu0 0.0
    %2206 = vmatprep.subr.mxu0 0.0
    %2207 = vmatpush1.msra.mxu0 0.0
    %2208 = vmatprep.subr.mxu0 0.0
    %2209 = vmatpush1.msra.mxu0 0.0
    %2210 = vmatprep.subr.mxu0 0.0
    %2211 = vmatpush1.msra.mxu0 0.0
    %2212 = vmatprep.subr.mxu0 0.0
    %2213 = vmatpush1.msra.mxu0 0.0
    %2214 = vmatprep.subr.mxu0 0.0
    %2215 = vmatpush1.msra.mxu0 0.0
    %2216 = vmatprep.subr.mxu0 0.0
    %2217 = vmatpush1.msra.mxu0 0.0
    %2218 = vmatprep.mubr.f32.mxu0 0.0
    %2219 = vmatmul.mubr.f32.gmra.mrb[0].mxu0 %v2152
    %v2220 = vpop.f32.mrb[0].mxu0
    %v2221 = vadd.f32 %v2150, %v2220
    %v2222 = vpop.f32.mrb[0].mxu0
    %2223 = vdwg.mxu0
    %vm2224 = vcmask 228352
    %v2225 = vsel %vm2224, %v2221, 0.0
    %v2226 = vrot.slane %v2225, 4
    %v2227 = vadd.f32 %v2225, %v2226
    %v2228 = vrot.slane %v2227, 2
    %v2229 = vadd.f32 %v2227, %v2228
    %v2230 = vrot.slane %v2229, 1
    %v2231 = vadd.f32 %v2229, %v2230
    %v2232 = vmul.f32 %v2231, %v2121
    %v2233 = vsub.f32 %v2221, %v2232
    %v2234 = vmul.f32 %v2233, %v2233
    %v2235 = vsel %vm2224, %v2234, 0.0
    %v2236 = vrot.slane %v2235, 4
    %v2237 = vadd.f32 %v2235, %v2236
    %v2238 = vrot.slane %v2237, 2
    %v2239 = vadd.f32 %v2237, %v2238
    %v2240 = vrot.slane %v2239, 1
    %v2241 = vadd.f32 %v2239, %v2240
    %v2242 = vmul.f32 %v2241, %v2121
    %v2243 = vadd.f32 %v2242, 1e-05
    %v2244 = vrsqrt.pop %v2243
    %v2245 = vmul.f32 %v2233, %v2244
    %v2246 = vlaneseq
    %v2247 = vshrl.u32 %v2246, 7
    %v2248 = vsub.s32 1, %v2247
    %v2249 = vrot.slane %v248, %v2248
    %v2250 = vmul.f32 %v2245, %v2249
    %v2251 = vlaneseq
    %v2252 = vshrl.u32 %v2251, 7
    %v2253 = vsub.s32 2, %v2252
    %v2254 = vrot.slane %v248, %v2253
    %v2255 = vadd.f32 %v2250, %v2254
    %v2256 = vtanh.pop %v2255
    %2258 = vrot.lane.b32.xlu0 %v113, 52
    %v2259 = vpop.permute.xlu0 %2258
    %vm2260 = vcmask 31744
    %v2261 = vsel %vm2260, %v2259, 0
    %vm2263 = vcmask 1043456
    %v2265 = vsel %vm2263, %v242, 0
    %2267 = vmatprep.subr.mxu0 0.0
    %2268 = vmatpush1.msra.mxu0 %v2265
    %2269 = vmatprep.subr.mxu0 0.0
    %2270 = vmatpush1.msra.mxu0 0.0
    %2271 = vmatprep.subr.mxu0 0.0
    %2272 = vmatpush1.msra.mxu0 0.0
    %2273 = vmatprep.subr.mxu0 0.0
    %2274 = vmatpush1.msra.mxu0 0.0
    %2275 = vmatprep.subr.mxu0 0.0
    %2276 = vmatpush1.msra.mxu0 0.0
    %2277 = vmatprep.subr.mxu0 0.0
    %2278 = vmatpush1.msra.mxu0 0.0
    %2279 = vmatprep.subr.mxu0 0.0
    %2280 = vmatpush1.msra.mxu0 0.0
    %2281 = vmatprep.subr.mxu0 0.0
    %2282 = vmatpush1.msra.mxu0 0.0
    %2283 = vmatprep.subr.mxu0 0.0
    %2284 = vmatpush1.msra.mxu0 0.0
    %2285 = vmatprep.subr.mxu0 0.0
    %2286 = vmatpush1.msra.mxu0 0.0
    %2287 = vmatprep.subr.mxu0 0.0
    %2288 = vmatpush1.msra.mxu0 0.0
    %2289 = vmatprep.subr.mxu0 0.0
    %2290 = vmatpush1.msra.mxu0 0.0
    %2291 = vmatprep.subr.mxu0 0.0
    %2292 = vmatpush1.msra.mxu0 0.0
    %2293 = vmatprep.subr.mxu0 0.0
    %2294 = vmatpush1.msra.mxu0 0.0
    %2295 = vmatprep.subr.mxu0 0.0
    %2296 = vmatpush1.msra.mxu0 0.0
    %2297 = vmatprep.subr.mxu0 0.0
    %2298 = vmatpush1.msra.mxu0 0.0
    %2299 = vmatprep.subr.mxu0 0.0
    %2300 = vmatpush1.msra.mxu0 0.0
    %2301 = vmatprep.subr.mxu0 0.0
    %2302 = vmatpush1.msra.mxu0 0.0
    %2303 = vmatprep.subr.mxu0 0.0
    %2304 = vmatpush1.msra.mxu0 0.0
    %2305 = vmatprep.subr.mxu0 0.0
    %2306 = vmatpush1.msra.mxu0 0.0
    %2307 = vmatprep.subr.mxu0 0.0
    %2308 = vmatpush1.msra.mxu0 0.0
    %2309 = vmatprep.subr.mxu0 0.0
    %2310 = vmatpush1.msra.mxu0 0.0
    %2311 = vmatprep.subr.mxu0 0.0
    %2312 = vmatpush1.msra.mxu0 0.0
    %2313 = vmatprep.subr.mxu0 0.0
    %2314 = vmatpush1.msra.mxu0 0.0
    %2315 = vmatprep.subr.mxu0 0.0
    %2316 = vmatpush1.msra.mxu0 0.0
    %2317 = vmatprep.subr.mxu0 0.0
    %2318 = vmatpush1.msra.mxu0 0.0
    %2319 = vmatprep.subr.mxu0 0.0
    %2320 = vmatpush1.msra.mxu0 0.0
    %2321 = vmatprep.subr.mxu0 0.0
    %2322 = vmatpush1.msra.mxu0 0.0
    %2323 = vmatprep.subr.mxu0 0.0
    %2324 = vmatpush1.msra.mxu0 0.0
    %2325 = vmatprep.subr.mxu0 0.0
    %2326 = vmatpush1.msra.mxu0 0.0
    %2327 = vmatprep.subr.mxu0 0.0
    %2328 = vmatpush1.msra.mxu0 0.0
    %2329 = vmatprep.subr.mxu0 0.0
    %2330 = vmatpush1.msra.mxu0 0.0
    %2331 = vmatprep.mubr.f32.mxu0 0.0
    %2332 = vmatmul.mubr.f32.gmra.mrb[0].mxu0 %v2261
    %v2333 = vpop.f32.mrb[0].mxu0
    %v2334 = vadd.f32 0.0, %v2333
    %v2335 = vpop.f32.mrb[0].mxu0
    %2336 = vdwg.mxu0
    %v2338 = vsel %vm2224, %v2256, 0
    %v2341 = vsel %vm2263, %v241, 0
    %2343 = vmatprep.subr.mxu0 0.0
    %2344 = vmatpush1.msra.mxu0 %v238
    %2345 = vmatprep.subr.mxu0 0.0
    %2346 = vmatpush1.msra.mxu0 %v239
    %2347 = vmatprep.subr.mxu0 0.0
    %2348 = vmatpush1.msra.mxu0 %v240
    %2349 = vmatprep.subr.mxu0 0.0
    %2350 = vmatpush1.msra.mxu0 %v2341
    %2351 = vmatprep.subr.mxu0 0.0
    %2352 = vmatpush1.msra.mxu0 0.0
    %2353 = vmatprep.subr.mxu0 0.0
    %2354 = vmatpush1.msra.mxu0 0.0
    %2355 = vmatprep.subr.mxu0 0.0
    %2356 = vmatpush1.msra.mxu0 0.0
    %2357 = vmatprep.subr.mxu0 0.0
    %2358 = vmatpush1.msra.mxu0 0.0
    %2359 = vmatprep.subr.mxu0 0.0
    %2360 = vmatpush1.msra.mxu0 0.0
    %2361 = vmatprep.subr.mxu0 0.0
    %2362 = vmatpush1.msra.mxu0 0.0
    %2363 = vmatprep.subr.mxu0 0.0
    %2364 = vmatpush1.msra.mxu0 0.0
    %2365 = vmatprep.subr.mxu0 0.0
    %2366 = vmatpush1.msra.mxu0 0.0
    %2367 = vmatprep.subr.mxu0 0.0
    %2368 = vmatpush1.msra.mxu0 0.0
    %2369 = vmatprep.subr.mxu0 0.0
    %2370 = vmatpush1.msra.mxu0 0.0
    %2371 = vmatprep.subr.mxu0 0.0
    %2372 = vmatpush1.msra.mxu0 0.0
    %2373 = vmatprep.subr.mxu0 0.0
    %2374 = vmatpush1.msra.mxu0 0.0
    %2375 = vmatprep.subr.mxu0 0.0
    %2376 = vmatpush1.msra.mxu0 0.0
    %2377 = vmatprep.subr.mxu0 0.0
    %2378 = vmatpush1.msra.mxu0 0.0
    %2379 = vmatprep.subr.mxu0 0.0
    %2380 = vmatpush1.msra.mxu0 0.0
    %2381 = vmatprep.subr.mxu0 0.0
    %2382 = vmatpush1.msra.mxu0 0.0
    %2383 = vmatprep.subr.mxu0 0.0
    %2384 = vmatpush1.msra.mxu0 0.0
    %2385 = vmatprep.subr.mxu0 0.0
    %2386 = vmatpush1.msra.mxu0 0.0
    %2387 = vmatprep.subr.mxu0 0.0
    %2388 = vmatpush1.msra.mxu0 0.0
    %2389 = vmatprep.subr.mxu0 0.0
    %2390 = vmatpush1.msra.mxu0 0.0
    %2391 = vmatprep.subr.mxu0 0.0
    %2392 = vmatpush1.msra.mxu0 0.0
    %2393 = vmatprep.subr.mxu0 0.0
    %2394 = vmatpush1.msra.mxu0 0.0
    %2395 = vmatprep.subr.mxu0 0.0
    %2396 = vmatpush1.msra.mxu0 0.0
    %2397 = vmatprep.subr.mxu0 0.0
    %2398 = vmatpush1.msra.mxu0 0.0
    %2399 = vmatprep.subr.mxu0 0.0
    %2400 = vmatpush1.msra.mxu0 0.0
    %2401 = vmatprep.subr.mxu0 0.0
    %2402 = vmatpush1.msra.mxu0 0.0
    %2403 = vmatprep.subr.mxu0 0.0
    %2404 = vmatpush1.msra.mxu0 0.0
    %2405 = vmatprep.subr.mxu0 0.0
    %2406 = vmatpush1.msra.mxu0 0.0
    %2407 = vmatprep.mubr.f32.mxu0 0.0
    %2408 = vmatmul.mubr.f32.gmra.mrb[0].mxu0 %v2338
    %v2409 = vpop.f32.mrb[0].mxu0
    %v2410 = vadd.f32 %v2334, %v2409
    %v2411 = vpop.f32.mrb[0].mxu0
    %2412 = vdwg.mxu0
    %v2413 = vlaneseq
    %v2414 = vshrl.u32 %v2413, 7
    %v2415 = vsub.s32 0, %v2414
    %v2416 = vrot.slane %v249, %v2415
    %v2417 = vadd.f32 %v2410, %v2416
    %v2418 = vtanh.pop %v2417
    %v2419 = vlaneseq
    %v2420 = vshrl.u32 %v2419, 7
    %v2421 = vsub.s32 1, %v2420
    %v2422 = vrot.slane %v249, %v2421
    %v2424 = vsel %vm2113, %v2418, 0
    %2426 = vmatprep.subr.mxu0 0.0
    %2427 = vmatpush1.msra.mxu0 %v243
    %2428 = vmatprep.subr.mxu0 0.0
    %2429 = vmatpush1.msra.mxu0 %v244
    %2430 = vmatprep.subr.mxu0 0.0
    %2431 = vmatpush1.msra.mxu0 %v245
    %2432 = vmatprep.subr.mxu0 0.0
    %2433 = vmatpush1.msra.mxu0 %v246
    %2434 = vmatprep.subr.mxu0 0.0
    %2435 = vmatpush1.msra.mxu0 0.0
    %2436 = vmatprep.subr.mxu0 0.0
    %2437 = vmatpush1.msra.mxu0 0.0
    %2438 = vmatprep.subr.mxu0 0.0
    %2439 = vmatpush1.msra.mxu0 0.0
    %2440 = vmatprep.subr.mxu0 0.0
    %2441 = vmatpush1.msra.mxu0 0.0
    %2442 = vmatprep.subr.mxu0 0.0
    %2443 = vmatpush1.msra.mxu0 0.0
    %2444 = vmatprep.subr.mxu0 0.0
    %2445 = vmatpush1.msra.mxu0 0.0
    %2446 = vmatprep.subr.mxu0 0.0
    %2447 = vmatpush1.msra.mxu0 0.0
    %2448 = vmatprep.subr.mxu0 0.0
    %2449 = vmatpush1.msra.mxu0 0.0
    %2450 = vmatprep.subr.mxu0 0.0
    %2451 = vmatpush1.msra.mxu0 0.0
    %2452 = vmatprep.subr.mxu0 0.0
    %2453 = vmatpush1.msra.mxu0 0.0
    %2454 = vmatprep.subr.mxu0 0.0
    %2455 = vmatpush1.msra.mxu0 0.0
    %2456 = vmatprep.subr.mxu0 0.0
    %2457 = vmatpush1.msra.mxu0 0.0
    %2458 = vmatprep.subr.mxu0 0.0
    %2459 = vmatpush1.msra.mxu0 0.0
    %2460 = vmatprep.subr.mxu0 0.0
    %2461 = vmatpush1.msra.mxu0 0.0
    %2462 = vmatprep.subr.mxu0 0.0
    %2463 = vmatpush1.msra.mxu0 0.0
    %2464 = vmatprep.subr.mxu0 0.0
    %2465 = vmatpush1.msra.mxu0 0.0
    %2466 = vmatprep.subr.mxu0 0.0
    %2467 = vmatpush1.msra.mxu0 0.0
    %2468 = vmatprep.subr.mxu0 0.0
    %2469 = vmatpush1.msra.mxu0 0.0
    %2470 = vmatprep.subr.mxu0 0.0
    %2471 = vmatpush1.msra.mxu0 0.0
    %2472 = vmatprep.subr.mxu0 0.0
    %2473 = vmatpush1.msra.mxu0 0.0
    %2474 = vmatprep.subr.mxu0 0.0
    %2475 = vmatpush1.msra.mxu0 0.0
    %2476 = vmatprep.subr.mxu0 0.0
    %2477 = vmatpush1.msra.mxu0 0.0
    %2478 = vmatprep.subr.mxu0 0.0
    %2479 = vmatpush1.msra.mxu0 0.0
    %2480 = vmatprep.subr.mxu0 0.0
    %2481 = vmatpush1.msra.mxu0 0.0
    %2482 = vmatprep.subr.mxu0 0.0
    %2483 = vmatpush1.msra.mxu0 0.0
    %2484 = vmatprep.subr.mxu0 0.0
    %2485 = vmatpush1.msra.mxu0 0.0
    %2486 = vmatprep.subr.mxu0 0.0
    %2487 = vmatpush1.msra.mxu0 0.0
    %2488 = vmatprep.subr.mxu0 0.0
    %2489 = vmatpush1.msra.mxu0 0.0
    %2490 = vmatprep.mubr.f32.mxu0 0.0
    %2491 = vmatmul.mubr.f32.gmra.mrb[0].mxu0 %v2424
    %v2492 = vpop.f32.mrb[0].mxu0
    %v2493 = vadd.f32 %v2422, %v2492
    %v2494 = vpop.f32.mrb[0].mxu0
    %2495 = vdwg.mxu0
    %vm2496 = vcmask 64512
    %2497 = vst.msk [vmem:[#allocation8] sm:$0xff] %vm2496, %v2493
    // Predicated region
    $region26: #{motion_planning_forward.1} parent=1 // pred_check
      _
    $region27: #{motion_planning_forward.1} parent=1 // pred_check_branch
      %2499 = sbr.rel (0) target = $region29
    $region28: #{motion_planning_forward.1} parent=1 // pred_region
      %s2501 = ssub.s32 128, 128
      %2502 = vsyncadd [#allocation4], %s2501
      %s2504 = sshll.u32 [#allocation8], 4
      %s2505 = int_to_ptr.vmem [resolvable:$true] %s2504
      %2507 = dma.vmem_to_hbm [thread:$0]  %s2505, 128, %s3, [#allocation4]
    $region29: #{motion_planning_forward.1} parent=1 // pred_fallthru
      _
    // Predicated region
    $region30: #{motion_planning_forward.1} parent=1 // pred_check
      _
    $region31: #{motion_planning_forward.1} parent=1 // pred_check_branch
      %2509 = sbr.rel (0) target = $region33
    $region32: #{motion_planning_forward.1} parent=1 // pred_region
      %2510 = dma.done [#allocation4], 128
    $region33: #{motion_planning_forward.1} parent=1 // pred_fallthru
      _
    %2511 = vsyncpa [#allocation3], 1
    %2512 = vsyncpa [#allocation6], 1
    %2513 = vsyncpa [#allocation4], 1

</llo_original>
